<compile_context>
chip_gen: v7x
topology: tpu7x:2x2x1
jax: 0.10.0
libtpu: 0.0.40
codegen_flags: <defaults>
</compile_context>

<pallas_src>
import math

import jax
import jax.numpy as jnp
from jax.experimental import pallas as pl
from jax.experimental.pallas import tpu as pltpu

# ----------------------------- config -----------------------------
VOCAB = 100
B, S, H = 2, 8, 32
N_HEADS = 4
DH = H // N_HEADS
FFN = 64
N_LAYERS = 2
MAX_POS = 128
EPS = 1e-12

# Padded (lane-dense) dimensions.
HP = 128                   # hidden padded to one full 128-lane register
M = B * S                  # flattened token count
QKV_W = 3 * HP             # Q | K | V groups, each in its own 128-lane slot
W_COLS = QKV_W + 3 * HP    # + WO slot + W1 slot + W2 slot = 768 lanes
WO_OFF = QKV_W             # column offsets inside the per-layer weight slab
W1_OFF = QKV_W + HP
W2_OFF = QKV_W + 2 * HP
VROWS = 16                 # rows of the per-layer bias/LN slab (10 used, padded to 16)


# ----------------------------- fused kernel -----------------------------
def bert_sts_kernel(x0_ref, amask_ref, pool_ref, w_ref, vec_ref, out_ref, x_sc):
    layer = pl.program_id(0)
    lane = jax.lax.broadcasted_iota(jnp.int32, (1, HP), 1)
    lane_mask = (lane < H).astype(jnp.float32)
    inv_h = 1.0 / H

    def res_layernorm(x, g, b):
        # LayerNorm over the H real lanes of an HP-padded activation.  Padded lanes
        # of x are zero and padded lanes of g/b are zero, so the result stays
        # zero-padded and the statistics match the unpadded math.
        mu = jnp.sum(x, axis=-1, keepdims=True) * inv_h
        c = (x - mu) * lane_mask
        var = jnp.sum(c * c, axis=-1, keepdims=True) * inv_h
        return c * jax.lax.rsqrt(var + EPS) * g + b

    # Seed the VMEM-resident residual stream at the first grid step.  The
    # embedding LayerNorm already happened on the host side.
    @pl.when(layer == 0)
    def _():
        x_sc[...] = x0_ref[...]

    x = x_sc[...]                       # (M, HP) f32 residual stream
    vec = vec_ref[...]                  # (VROWS, HP) f32 bias/LN slab
    amask = amask_ref[...]              # (B, 1, S) additive attention mask

    # ---- fused QKV projection (one bf16 matmul against the packed slab) ----
    xb = x.astype(jnp.bfloat16)
    qkv = jnp.dot(xb, w_ref[:, 0:QKV_W],
                  preferred_element_type=jnp.float32)          # (M, 3*HP) f32
    q = qkv[:, 0:HP] + vec[0:1, :]
    k = qkv[:, HP:2 * HP] + vec[1:2, :]
    v = qkv[:, 2 * HP:3 * HP] + vec[2:3, :]

    # ---- multi-head attention: heads packed contiguously in the first 32 lanes ----
    scale = 1.0 / math.sqrt(DH)
    ctx_heads = []
    for h in range(N_HEADS):            # static unroll; each einsum has 1 batch dim
        sl = slice(h * DH, (h + 1) * DH)
        qh = q[:, sl].reshape(B, S, DH)
        kh = k[:, sl].reshape(B, S, DH)
        vh = v[:, sl].reshape(B, S, DH)
        s = jnp.einsum("bqd,bkd->bqk", qh, kh,
                       preferred_element_type=jnp.float32) * scale + amask
        p = jax.nn.softmax(s, axis=-1)
        ctx_heads.append(jnp.einsum("bqk,bkd->bqd", p, vh,
                                    preferred_element_type=jnp.float32))
    ctx = jnp.concatenate(ctx_heads, axis=-1).reshape(M, N_HEADS * DH)   # (M, 32)

    # ---- single output projection + residual + LayerNorm ----
    wo = w_ref[0:N_HEADS * DH, WO_OFF:WO_OFF + HP]             # (32, HP) bf16
    attn = jnp.dot(ctx.astype(jnp.bfloat16), wo,
                   preferred_element_type=jnp.float32) + vec[3:4, :]
    x = res_layernorm(x + attn, vec[4:5, :], vec[5:6, :])

    # ---- FFN (dense -> GELU -> dense) + residual + LayerNorm ----
    # TODO(synk): HF BERT uses exact erf-GELU; tanh approximation used here.
    hdn = jnp.dot(x.astype(jnp.bfloat16), w_ref[:, W1_OFF:W1_OFF + HP],
                  preferred_element_type=jnp.float32) + vec[6:7, :]
    hdn = jax.nn.gelu(hdn, approximate=True)
    ffn = jnp.dot(hdn.astype(jnp.bfloat16), w_ref[:, W2_OFF:W2_OFF + HP],
                  preferred_element_type=jnp.float32) + vec[7:8, :]
    x = res_layernorm(x + ffn, vec[8:9, :], vec[9:10, :])
    x_sc[...] = x

    # ---- masked-mean pooling (mask / denominator folded into pool matrix) ----
    @pl.when(layer == pl.num_programs(0) - 1)
    def _():
        out_ref[...] = jnp.dot(pool_ref[...], x, preferred_element_type=jnp.float32)


# ----------------------------- weight packing -----------------------------
def pack_params(params):
    """Per layer: one bf16 (HP, W_COLS) weight slab + one f32 (VROWS, HP) vector slab."""
    w_l, v_l = [], []
    for lp in params["layers"]:
        w = jnp.zeros((HP, W_COLS), jnp.float32)
        # Q | K | V groups (heads contiguous in the first H lanes of each group).
        w = w.at[:H, 0:H].set(lp["wq"])
        w = w.at[:H, HP:HP + H].set(lp["wk"])
        w = w.at[:H, 2 * HP:2 * HP + H].set(lp["wv"])
        # Attention output projection: ctx lanes (32 real rows) -> hidden.
        w = w.at[:H, WO_OFF:WO_OFF + H].set(lp["wo"])
        # FFN.
        w = w.at[:H, W1_OFF:W1_OFF + FFN].set(lp["w1"])
        w = w.at[:FFN, W2_OFF:W2_OFF + H].set(lp["w2"])
        w_l.append(w.astype(jnp.bfloat16))

        v = jnp.zeros((VROWS, HP), jnp.float32)
        v = v.at[0, :H].set(lp["bq"])
        v = v.at[1, :H].set(lp["bk"])
        v = v.at[2, :H].set(lp["bv"])
        v = v.at[3, :H].set(lp["bo"])
        v = v.at[4, :H].set(lp["ln1_g"])
        v = v.at[5, :H].set(lp["ln1_b"])
        v = v.at[6, :FFN].set(lp["b1"])
        v = v.at[7, :H].set(lp["b2"])
        v = v.at[8, :H].set(lp["ln2_g"])
        v = v.at[9, :H].set(lp["ln2_b"])
        v_l.append(v)
    return jnp.stack(w_l, axis=0), jnp.stack(v_l, axis=0)


# ----------------------------- forward -----------------------------
def bert_for_sts_forward(params, input_ids, token_type_ids, attention_mask):
    """Returns the 'sentence_embedding' of shape (B, H)."""
    mask_f = attention_mask.astype(jnp.float32)

    # Embedding gathers + embedding LayerNorm stay in XLA glue (data-dependent
    # gather; LN moved out of the kernel per the perf review).
    pos_ids = jnp.arange(S)
    emb = (params["word_emb"][input_ids]
           + params["pos_emb"][pos_ids][None, :, :]
           + params["type_emb"][token_type_ids])                      # (B, S, H)
    mu = jnp.mean(emb, axis=-1, keepdims=True)
    var = jnp.mean((emb - mu) ** 2, axis=-1, keepdims=True)
    emb = (emb - mu) * jax.lax.rsqrt(var + EPS) * params["emb_ln_g"] + params["emb_ln_b"]
    x0 = jnp.zeros((M, HP), jnp.float32).at[:, :H].set(emb.reshape(M, H))

    # Additive attention mask and the masked-mean pooling matrix.
    amask = ((1.0 - mask_f) * -1e9)[:, None, :]                        # (B, 1, S)
    denom = jnp.maximum(mask_f.sum(axis=1, keepdims=True), 1e-9)
    pool_w = mask_f / denom                                            # (B, S)
    pool_mat = jnp.einsum("bc,bs->bcs", jnp.eye(B, dtype=jnp.float32),
                          pool_w).reshape(B, M)                        # (B, B*S)

    wslab, vslab = pack_params(params)

    grid_spec = pltpu.PrefetchScalarGridSpec(
        num_scalar_prefetch=0,
        grid=(N_LAYERS,),
        in_specs=[
            pl.BlockSpec((M, HP), lambda l: (0, 0)),                  # x0 (resident)
            pl.BlockSpec((B, 1, S), lambda l: (0, 0, 0)),             # additive mask
            pl.BlockSpec((B, M), lambda l: (0, 0)),                   # pooling matrix
            pl.BlockSpec((None, HP, W_COLS), lambda l: (l, 0, 0)),    # bf16 weight slab
            pl.BlockSpec((None, VROWS, HP), lambda l: (l, 0, 0)),     # f32 bias/LN slab
        ],
        out_specs=pl.BlockSpec((B, HP), lambda l: (0, 0)),
        scratch_shapes=[pltpu.VMEM((M, HP), jnp.float32)],
    )

    out = pl.pallas_call(
        bert_sts_kernel,
        out_shape=jax.ShapeDtypeStruct((B, HP), jnp.float32),
        grid_spec=grid_spec,
        compiler_params=pltpu.CompilerParams(
            dimension_semantics=("arbitrary",)),   # sequential over layers
    )(x0, amask, pool_mat, wslab, vslab)

    return out[:, :H]


# ----------------------------- pure-JAX reference -----------------------------
def bert_for_sts_reference(params, input_ids, token_type_ids, attention_mask):
    with jax.default_matmul_precision("highest"):
        mask_f = attention_mask.astype(jnp.float32)
        pos_ids = jnp.arange(S)
        x = (params["word_emb"][input_ids]
             + params["pos_emb"][pos_ids][None, :, :]
             + params["type_emb"][token_type_ids])

        def ln(t, g, b):
            mu = jnp.mean(t, -1, keepdims=True)
            var = jnp.mean((t - mu) ** 2, -1, keepdims=True)
            return (t - mu) * jax.lax.rsqrt(var + EPS) * g + b

        x = ln(x, params["emb_ln_g"], params["emb_ln_b"])
        keep = mask_f[:, None, None, :] > 0.0
        for lp in params["layers"]:
            q = x @ lp["wq"] + lp["bq"]
            k = x @ lp["wk"] + lp["bk"]
            v = x @ lp["wv"] + lp["bv"]
            qh = q.reshape(B, S, N_HEADS, DH).transpose(0, 2, 1, 3)
            kh = k.reshape(B, S, N_HEADS, DH).transpose(0, 2, 1, 3)
            vh = v.reshape(B, S, N_HEADS, DH).transpose(0, 2, 1, 3)
            s = jnp.einsum("bhqd,bhkd->bhqk", qh, kh) / math.sqrt(DH)
            s = jnp.where(keep, s, -1e9)
            p = jax.nn.softmax(s, -1)
            ctx = jnp.einsum("bhqk,bhkd->bhqd", p, vh)
            ctx = ctx.transpose(0, 2, 1, 3).reshape(B, S, H)
            x = ln(x + ctx @ lp["wo"] + lp["bo"], lp["ln1_g"], lp["ln1_b"])
            hdn = jax.nn.gelu(x @ lp["w1"] + lp["b1"], approximate=True)
            x = ln(x + hdn @ lp["w2"] + lp["b2"], lp["ln2_g"], lp["ln2_b"])
        mm = mask_f[:, :, None]
        return (x * mm).sum(1) / jnp.maximum(mm.sum(1), 1e-9)


# ----------------------------- params -----------------------------
def init_params(key):
    def normal(k, shape):
        return 0.02 * jax.random.normal(k, shape, jnp.float32)

    keys = jax.random.split(key, 4 + N_LAYERS)
    params = {
        "word_emb": normal(keys[0], (VOCAB, H)),
        "pos_emb": normal(keys[1], (MAX_POS, H)),
        "type_emb": normal(keys[2], (2, H)),
        "emb_ln_g": jnp.ones((H,), jnp.float32),
        "emb_ln_b": jnp.zeros((H,), jnp.float32),
        "layers": [],
    }
    for li in range(N_LAYERS):
        lk = jax.random.split(keys[4 + li], 6)
        params["layers"].append({
            "wq": normal(lk[0], (H, H)), "bq": jnp.zeros((H,), jnp.float32),
            "wk": normal(lk[1], (H, H)), "bk": jnp.zeros((H,), jnp.float32),
            "wv": normal(lk[2], (H, H)), "bv": jnp.zeros((H,), jnp.float32),
            "wo": normal(lk[3], (H, H)), "bo": jnp.zeros((H,), jnp.float32),
            "ln1_g": jnp.ones((H,), jnp.float32), "ln1_b": jnp.zeros((H,), jnp.float32),
            "w1": normal(lk[4], (H, FFN)), "b1": jnp.zeros((FFN,), jnp.float32),
            "w2": normal(lk[5], (FFN, H)), "b2": jnp.zeros((H,), jnp.float32),
            "ln2_g": jnp.ones((H,), jnp.float32), "ln2_b": jnp.zeros((H,), jnp.float32),
        })
    return params


# ----------------------------- main -----------------------------
if __name__ == "__main__":
    key = jax.random.PRNGKey(0)
    pkey, ikey = jax.random.split(key)
    params = init_params(pkey)

    input_ids = jax.random.randint(ikey, (B, S), 0, VOCAB, dtype=jnp.int32)
    token_type_ids = jnp.zeros((B, S), jnp.int32)
    lengths = jnp.array([S, S - 3], jnp.int32)          # second sentence is padded
    attention_mask = (jnp.arange(S)[None, :] < lengths[:, None]).astype(jnp.int32)

    emb = bert_for_sts_forward(params, input_ids, token_type_ids, attention_mask)
    emb = jax.block_until_ready(emb)
    assert emb.shape == (B, H) and emb.dtype == jnp.float32

    ref = jax.block_until_ready(
        bert_for_sts_reference(params, input_ids, token_type_ids, attention_mask))
    max_diff = jnp.max(jnp.abs(emb - ref))
    assert jnp.allclose(emb, ref, atol=2e-2, rtol=2e-2), f"max abs diff {max_diff}"

    print("KERNEL_OK")
</pallas_src>

<mosaic_0001>
module attributes {stable_mosaic.version = 11 : i64} {
  func.func @bert_sts_kernel(%arg0: i32, %arg1: memref<16x128xf32, #tpu.memory_space<vmem>>, %arg2: memref<2x1x8xf32, #tpu.memory_space<vmem>>, %arg3: memref<2x16xf32, #tpu.memory_space<vmem>>, %arg4: memref<1x128x768xbf16, #tpu.memory_space<vmem>>, %arg5: memref<1x16x128xf32, #tpu.memory_space<vmem>>, %arg6: memref<2x128xf32, #tpu.memory_space<vmem>>, %arg7: memref<16x128xf32, #tpu.memory_space<vmem>>) attributes {dimension_semantics = [#tpu.dimension_semantics<arbitrary>], iteration_bounds = array<i64: 2>, scalar_prefetch = 0 : i64, scratch_operands = 1 : i64, tpu.core_type = #tpu.core_type<tc>, window_params = [{pipeline_mode = #tpu.pipeline_mode<synchronous>, transform_indices = @transform_0, window_bounds = array<i64: 16, 128>}, {pipeline_mode = #tpu.pipeline_mode<synchronous>, transform_indices = @transform_1, window_bounds = array<i64: 2, 1, 8>}, {pipeline_mode = #tpu.pipeline_mode<synchronous>, transform_indices = @transform_2, window_bounds = array<i64: 2, 16>}, {transform_indices = @transform_3, window_bounds = array<i64: 1, 128, 768>}, {transform_indices = @transform_4, window_bounds = array<i64: 1, 16, 128>}, {pipeline_mode = #tpu.pipeline_mode<synchronous>, transform_indices = @transform_5, window_bounds = array<i64: 2, 128>}]} {
    %0 = tpu.iota {dimensions = array<i32: 1>} : vector<1x128xi32>
    %c32_i32 = arith.constant 32 : i32
    %1 = vector.broadcast %c32_i32 : i32 to vector<1x128xi32>
    %2 = arith.cmpi slt, %0, %1 : vector<1x128xi32>
    %3 = arith.extui %2 : vector<1x128xi1> to vector<1x128xi32>
    %4 = arith.sitofp %3 : vector<1x128xi32> to vector<1x128xf32>
    %c0_i32 = arith.constant 0 : i32
    %5 = arith.cmpi eq, %arg0, %c0_i32 : i32
    %6 = arith.extui %5 : i1 to i32
    %c0_i32_0 = arith.constant 0 : i32
    %7 = arith.cmpi ne, %6, %c0_i32_0 : i32
    scf.if %7 {
      %c0_61 = arith.constant 0 : index
      %c0_62 = arith.constant 0 : index
      %210 = vector.load %arg1[%c0_61, %c0_62] : memref<16x128xf32, #tpu.memory_space<vmem>>, vector<16x128xf32>
      %c0_63 = arith.constant 0 : index
      %c0_64 = arith.constant 0 : index
      %211 = vector.load %arg7[%c0_63, %c0_64] : memref<16x128xf32, #tpu.memory_space<vmem>>, vector<16x128xf32>
      tpu.vector_store %arg7[%c0_63, %c0_64], %210 {strides = array<i32>} : memref<16x128xf32, #tpu.memory_space<vmem>>, vector<16x128xf32>,
    } else {
    }
    %c0 = arith.constant 0 : index
    %c0_1 = arith.constant 0 : index
    %8 = vector.load %arg7[%c0, %c0_1] : memref<16x128xf32, #tpu.memory_space<vmem>>, vector<16x128xf32>
    %c0_2 = arith.constant 0 : index
    %c0_3 = arith.constant 0 : index
    %c0_4 = arith.constant 0 : index
    %9 = vector.load %arg5[%c0_2, %c0_3, %c0_4] : memref<1x16x128xf32, #tpu.memory_space<vmem>>, vector<1x16x128xf32>
    %10 = vector.shape_cast %9 : vector<1x16x128xf32> to vector<16x128xf32>
    %c0_5 = arith.constant 0 : index
    %c0_6 = arith.constant 0 : index
    %c0_7 = arith.constant 0 : index
    %11 = vector.load %arg2[%c0_5, %c0_6, %c0_7] : memref<2x1x8xf32, #tpu.memory_space<vmem>>, vector<2x1x8xf32>
    %12 = arith.truncf %8 : vector<16x128xf32> to vector<16x128xbf16>
    %c0_8 = arith.constant 0 : index
    %c0_9 = arith.constant 0 : index
    %c0_10 = arith.constant 0 : index
    %13 = vector.load %arg4[%c0_8, %c0_9, %c0_10] : memref<1x128x768xbf16, #tpu.memory_space<vmem>>, vector<1x128x384xbf16>
    %14 = vector.shape_cast %13 : vector<1x128x384xbf16> to vector<128x384xbf16>
    %cst = arith.constant dense<0.000000e+00> : vector<16x384xf32>
    %15 = tpu.matmul %12, %14, %cst {dimension_numbers = #tpu.dot_dimension_numbers<[1], [0], [0], [1], [0, 0, 1, 1], [], []>} : vector<16x128xbf16>, vector<128x384xbf16>, vector<16x384xf32> -> vector<16x384xf32>
    %16 = vector.extract_strided_slice %15 {offsets = [0, 0], sizes = [16, 128], strides = [1, 1]} : vector<16x384xf32> to vector<16x128xf32>
    %17 = vector.extract_strided_slice %10 {offsets = [0, 0], sizes = [1, 128], strides = [1, 1]} : vector<16x128xf32> to vector<1x128xf32>
    %18 = vector.broadcast %17 : vector<1x128xf32> to vector<16x128xf32>
    %19 = arith.addf %16, %18 : vector<16x128xf32>
    %20 = vector.extract_strided_slice %15 {offsets = [0, 128], sizes = [16, 128], strides = [1, 1]} : vector<16x384xf32> to vector<16x128xf32>
    %21 = vector.extract_strided_slice %10 {offsets = [1, 0], sizes = [1, 128], strides = [1, 1]} : vector<16x128xf32> to vector<1x128xf32>
    %22 = vector.broadcast %21 : vector<1x128xf32> to vector<16x128xf32>
    %23 = arith.addf %20, %22 : vector<16x128xf32>
    %24 = vector.extract_strided_slice %15 {offsets = [0, 256], sizes = [16, 128], strides = [1, 1]} : vector<16x384xf32> to vector<16x128xf32>
    %25 = vector.extract_strided_slice %10 {offsets = [2, 0], sizes = [1, 128], strides = [1, 1]} : vector<16x128xf32> to vector<1x128xf32>
    %26 = vector.broadcast %25 : vector<1x128xf32> to vector<16x128xf32>
    %27 = arith.addf %24, %26 : vector<16x128xf32>
    %28 = vector.extract_strided_slice %19 {offsets = [0, 0], sizes = [16, 8], strides = [1, 1]} : vector<16x128xf32> to vector<16x8xf32>
    %29 = vector.shape_cast %28 : vector<16x8xf32> to vector<2x8x8xf32>
    %30 = vector.extract_strided_slice %23 {offsets = [0, 0], sizes = [16, 8], strides = [1, 1]} : vector<16x128xf32> to vector<16x8xf32>
    %31 = vector.shape_cast %30 : vector<16x8xf32> to vector<2x8x8xf32>
    %32 = vector.extract_strided_slice %27 {offsets = [0, 0], sizes = [16, 8], strides = [1, 1]} : vector<16x128xf32> to vector<16x8xf32>
    %33 = vector.shape_cast %32 : vector<16x8xf32> to vector<2x8x8xf32>
    "tpu.trace_start"() <{level = 10 : i32, message = "bqd,bkd->bqk"}> : () -> ()
    %cst_11 = arith.constant dense<0.000000e+00> : vector<2x8x8xf32>
    %34 = tpu.matmul %29, %31, %cst_11 {dimension_numbers = #tpu.dot_dimension_numbers<[2], [2], [1], [1], [0, 0, 0, 1, 1, 1], [0], [0]>} : vector<2x8x8xf32>, vector<2x8x8xf32>, vector<2x8x8xf32> -> vector<2x8x8xf32>
    "tpu.trace_stop"() : () -> ()
    %cst_12 = arith.constant 0.353553385 : f32
    %35 = vector.broadcast %cst_12 : f32 to vector<2x8x8xf32>
    %36 = arith.mulf %34, %35 : vector<2x8x8xf32>
    %37 = vector.broadcast %11 : vector<2x1x8xf32> to vector<2x8x8xf32>
    %38 = arith.addf %36, %37 : vector<2x8x8xf32>
    %cst_13 = arith.constant dense<0xFF800000> : vector<2x8xf32>
    %39 = vector.multi_reduction <maximumf>, %38, %cst_13 [2] : vector<2x8x8xf32> to vector<2x8xf32>
    %cst_14 = arith.constant 0xFF800000 : f32
    %40 = vector.broadcast %cst_14 : f32 to vector<2x8xf32>
    %41 = arith.maximumf %40, %39 : vector<2x8xf32>
    %42 = vector.shape_cast %41 : vector<2x8xf32> to vector<2x8x1xf32>
    %43 = vector.broadcast %42 : vector<2x8x1xf32> to vector<2x8x8xf32>
    %44 = arith.subf %38, %43 : vector<2x8x8xf32>
    %45 = math.exp %44 : vector<2x8x8xf32>
    %cst_15 = arith.constant dense<0.000000e+00> : vector<2x8xf32>
    %46 = vector.multi_reduction <add>, %45, %cst_15 [2] : vector<2x8x8xf32> to vector<2x8xf32>
    %47 = vector.shape_cast %46 : vector<2x8xf32> to vector<2x8x1xf32>
    %48 = vector.broadcast %47 : vector<2x8x1xf32> to vector<2x8x8xf32>
    %49 = arith.divf %45, %48 : vector<2x8x8xf32>
    "tpu.trace_start"() <{level = 10 : i32, message = "bqk,bkd->bqd"}> : () -> ()
    %cst_16 = arith.constant dense<0.000000e+00> : vector<2x8x8xf32>
    %50 = tpu.matmul %49, %33, %cst_16 {dimension_numbers = #tpu.dot_dimension_numbers<[2], [1], [1], [2], [0, 0, 0, 1, 1, 2], [0], [0]>} : vector<2x8x8xf32>, vector<2x8x8xf32>, vector<2x8x8xf32> -> vector<2x8x8xf32>
    "tpu.trace_stop"() : () -> ()
    %51 = vector.extract_strided_slice %19 {offsets = [0, 8], sizes = [16, 8], strides = [1, 1]} : vector<16x128xf32> to vector<16x8xf32>
    %52 = vector.shape_cast %51 : vector<16x8xf32> to vector<2x8x8xf32>
    %53 = vector.extract_strided_slice %23 {offsets = [0, 8], sizes = [16, 8], strides = [1, 1]} : vector<16x128xf32> to vector<16x8xf32>
    %54 = vector.shape_cast %53 : vector<16x8xf32> to vector<2x8x8xf32>
    %55 = vector.extract_strided_slice %27 {offsets = [0, 8], sizes = [16, 8], strides = [1, 1]} : vector<16x128xf32> to vector<16x8xf32>
    %56 = vector.shape_cast %55 : vector<16x8xf32> to vector<2x8x8xf32>
    "tpu.trace_start"() <{level = 10 : i32, message = "bqd,bkd->bqk"}> : () -> ()
    %cst_17 = arith.constant dense<0.000000e+00> : vector<2x8x8xf32>
    %57 = tpu.matmul %52, %54, %cst_17 {dimension_numbers = #tpu.dot_dimension_numbers<[2], [2], [1], [1], [0, 0, 0, 1, 1, 1], [0], [0]>} : vector<2x8x8xf32>, vector<2x8x8xf32>, vector<2x8x8xf32> -> vector<2x8x8xf32>
    "tpu.trace_stop"() : () -> ()
    %cst_18 = arith.constant 0.353553385 : f32
    %58 = vector.broadcast %cst_18 : f32 to vector<2x8x8xf32>
    %59 = arith.mulf %57, %58 : vector<2x8x8xf32>
    %60 = vector.broadcast %11 : vector<2x1x8xf32> to vector<2x8x8xf32>
    %61 = arith.addf %59, %60 : vector<2x8x8xf32>
    %cst_19 = arith.constant dense<0xFF800000> : vector<2x8xf32>
    %62 = vector.multi_reduction <maximumf>, %61, %cst_19 [2] : vector<2x8x8xf32> to vector<2x8xf32>
    %cst_20 = arith.constant 0xFF800000 : f32
    %63 = vector.broadcast %cst_20 : f32 to vector<2x8xf32>
    %64 = arith.maximumf %63, %62 : vector<2x8xf32>
    %65 = vector.shape_cast %64 : vector<2x8xf32> to vector<2x8x1xf32>
    %66 = vector.broadcast %65 : vector<2x8x1xf32> to vector<2x8x8xf32>
    %67 = arith.subf %61, %66 : vector<2x8x8xf32>
    %68 = math.exp %67 : vector<2x8x8xf32>
    %cst_21 = arith.constant dense<0.000000e+00> : vector<2x8xf32>
    %69 = vector.multi_reduction <add>, %68, %cst_21 [2] : vector<2x8x8xf32> to vector<2x8xf32>
    %70 = vector.shape_cast %69 : vector<2x8xf32> to vector<2x8x1xf32>
    %71 = vector.broadcast %70 : vector<2x8x1xf32> to vector<2x8x8xf32>
    %72 = arith.divf %68, %71 : vector<2x8x8xf32>
    "tpu.trace_start"() <{level = 10 : i32, message = "bqk,bkd->bqd"}> : () -> ()
    %cst_22 = arith.constant dense<0.000000e+00> : vector<2x8x8xf32>
    %73 = tpu.matmul %72, %56, %cst_22 {dimension_numbers = #tpu.dot_dimension_numbers<[2], [1], [1], [2], [0, 0, 0, 1, 1, 2], [0], [0]>} : vector<2x8x8xf32>, vector<2x8x8xf32>, vector<2x8x8xf32> -> vector<2x8x8xf32>
    "tpu.trace_stop"() : () -> ()
    %74 = vector.extract_strided_slice %19 {offsets = [0, 16], sizes = [16, 8], strides = [1, 1]} : vector<16x128xf32> to vector<16x8xf32>
    %75 = vector.shape_cast %74 : vector<16x8xf32> to vector<2x8x8xf32>
    %76 = vector.extract_strided_slice %23 {offsets = [0, 16], sizes = [16, 8], strides = [1, 1]} : vector<16x128xf32> to vector<16x8xf32>
    %77 = vector.shape_cast %76 : vector<16x8xf32> to vector<2x8x8xf32>
    %78 = vector.extract_strided_slice %27 {offsets = [0, 16], sizes = [16, 8], strides = [1, 1]} : vector<16x128xf32> to vector<16x8xf32>
    %79 = vector.shape_cast %78 : vector<16x8xf32> to vector<2x8x8xf32>
    "tpu.trace_start"() <{level = 10 : i32, message = "bqd,bkd->bqk"}> : () -> ()
    %cst_23 = arith.constant dense<0.000000e+00> : vector<2x8x8xf32>
    %80 = tpu.matmul %75, %77, %cst_23 {dimension_numbers = #tpu.dot_dimension_numbers<[2], [2], [1], [1], [0, 0, 0, 1, 1, 1], [0], [0]>} : vector<2x8x8xf32>, vector<2x8x8xf32>, vector<2x8x8xf32> -> vector<2x8x8xf32>
    "tpu.trace_stop"() : () -> ()
    %cst_24 = arith.constant 0.353553385 : f32
    %81 = vector.broadcast %cst_24 : f32 to vector<2x8x8xf32>
    %82 = arith.mulf %80, %81 : vector<2x8x8xf32>
    %83 = vector.broadcast %11 : vector<2x1x8xf32> to vector<2x8x8xf32>
    %84 = arith.addf %82, %83 : vector<2x8x8xf32>
    %cst_25 = arith.constant dense<0xFF800000> : vector<2x8xf32>
    %85 = vector.multi_reduction <maximumf>, %84, %cst_25 [2] : vector<2x8x8xf32> to vector<2x8xf32>
    %cst_26 = arith.constant 0xFF800000 : f32
    %86 = vector.broadcast %cst_26 : f32 to vector<2x8xf32>
    %87 = arith.maximumf %86, %85 : vector<2x8xf32>
    %88 = vector.shape_cast %87 : vector<2x8xf32> to vector<2x8x1xf32>
    %89 = vector.broadcast %88 : vector<2x8x1xf32> to vector<2x8x8xf32>
    %90 = arith.subf %84, %89 : vector<2x8x8xf32>
    %91 = math.exp %90 : vector<2x8x8xf32>
    %cst_27 = arith.constant dense<0.000000e+00> : vector<2x8xf32>
    %92 = vector.multi_reduction <add>, %91, %cst_27 [2] : vector<2x8x8xf32> to vector<2x8xf32>
    %93 = vector.shape_cast %92 : vector<2x8xf32> to vector<2x8x1xf32>
    %94 = vector.broadcast %93 : vector<2x8x1xf32> to vector<2x8x8xf32>
    %95 = arith.divf %91, %94 : vector<2x8x8xf32>
    "tpu.trace_start"() <{level = 10 : i32, message = "bqk,bkd->bqd"}> : () -> ()
    %cst_28 = arith.constant dense<0.000000e+00> : vector<2x8x8xf32>
    %96 = tpu.matmul %95, %79, %cst_28 {dimension_numbers = #tpu.dot_dimension_numbers<[2], [1], [1], [2], [0, 0, 0, 1, 1, 2], [0], [0]>} : vector<2x8x8xf32>, vector<2x8x8xf32>, vector<2x8x8xf32> -> vector<2x8x8xf32>
    "tpu.trace_stop"() : () -> ()
    %97 = vector.extract_strided_slice %19 {offsets = [0, 24], sizes = [16, 8], strides = [1, 1]} : vector<16x128xf32> to vector<16x8xf32>
    %98 = vector.shape_cast %97 : vector<16x8xf32> to vector<2x8x8xf32>
    %99 = vector.extract_strided_slice %23 {offsets = [0, 24], sizes = [16, 8], strides = [1, 1]} : vector<16x128xf32> to vector<16x8xf32>
    %100 = vector.shape_cast %99 : vector<16x8xf32> to vector<2x8x8xf32>
    %101 = vector.extract_strided_slice %27 {offsets = [0, 24], sizes = [16, 8], strides = [1, 1]} : vector<16x128xf32> to vector<16x8xf32>
    %102 = vector.shape_cast %101 : vector<16x8xf32> to vector<2x8x8xf32>
    "tpu.trace_start"() <{level = 10 : i32, message = "bqd,bkd->bqk"}> : () -> ()
    %cst_29 = arith.constant dense<0.000000e+00> : vector<2x8x8xf32>
    %103 = tpu.matmul %98, %100, %cst_29 {dimension_numbers = #tpu.dot_dimension_numbers<[2], [2], [1], [1], [0, 0, 0, 1, 1, 1], [0], [0]>} : vector<2x8x8xf32>, vector<2x8x8xf32>, vector<2x8x8xf32> -> vector<2x8x8xf32>
    "tpu.trace_stop"() : () -> ()
    %cst_30 = arith.constant 0.353553385 : f32
    %104 = vector.broadcast %cst_30 : f32 to vector<2x8x8xf32>
    %105 = arith.mulf %103, %104 : vector<2x8x8xf32>
    %106 = vector.broadcast %11 : vector<2x1x8xf32> to vector<2x8x8xf32>
    %107 = arith.addf %105, %106 : vector<2x8x8xf32>
    %cst_31 = arith.constant dense<0xFF800000> : vector<2x8xf32>
    %108 = vector.multi_reduction <maximumf>, %107, %cst_31 [2] : vector<2x8x8xf32> to vector<2x8xf32>
    %cst_32 = arith.constant 0xFF800000 : f32
    %109 = vector.broadcast %cst_32 : f32 to vector<2x8xf32>
    %110 = arith.maximumf %109, %108 : vector<2x8xf32>
    %111 = vector.shape_cast %110 : vector<2x8xf32> to vector<2x8x1xf32>
    %112 = vector.broadcast %111 : vector<2x8x1xf32> to vector<2x8x8xf32>
    %113 = arith.subf %107, %112 : vector<2x8x8xf32>
    %114 = math.exp %113 : vector<2x8x8xf32>
    %cst_33 = arith.constant dense<0.000000e+00> : vector<2x8xf32>
    %115 = vector.multi_reduction <add>, %114, %cst_33 [2] : vector<2x8x8xf32> to vector<2x8xf32>
    %116 = vector.shape_cast %115 : vector<2x8xf32> to vector<2x8x1xf32>
    %117 = vector.broadcast %116 : vector<2x8x1xf32> to vector<2x8x8xf32>
    %118 = arith.divf %114, %117 : vector<2x8x8xf32>
    "tpu.trace_start"() <{level = 10 : i32, message = "bqk,bkd->bqd"}> : () -> ()
    %cst_34 = arith.constant dense<0.000000e+00> : vector<2x8x8xf32>
    %119 = tpu.matmul %118, %102, %cst_34 {dimension_numbers = #tpu.dot_dimension_numbers<[2], [1], [1], [2], [0, 0, 0, 1, 1, 2], [0], [0]>} : vector<2x8x8xf32>, vector<2x8x8xf32>, vector<2x8x8xf32> -> vector<2x8x8xf32>
    "tpu.trace_stop"() : () -> ()
    %120 = tpu.concatenate %50, %73, %96, %119 in 2 : vector<2x8x8xf32>, vector<2x8x8xf32>, vector<2x8x8xf32>, vector<2x8x8xf32> -> vector<2x8x32xf32>
    %121 = vector.shape_cast %120 : vector<2x8x32xf32> to vector<16x32xf32>
    %c0_35 = arith.constant 0 : index
    %c0_36 = arith.constant 0 : index
    %c384 = arith.constant 384 : index
    %122 = vector.load %arg4[%c0_35, %c0_36, %c384] : memref<1x128x768xbf16, #tpu.memory_space<vmem>>, vector<1x32x128xbf16>
    %123 = vector.shape_cast %122 : vector<1x32x128xbf16> to vector<32x128xbf16>
    %124 = arith.truncf %121 : vector<16x32xf32> to vector<16x32xbf16>
    %cst_37 = arith.constant dense<0.000000e+00> : vector<16x128xf32>
    %125 = tpu.matmul %124, %123, %cst_37 {dimension_numbers = #tpu.dot_dimension_numbers<[1], [0], [0], [1], [0, 0, 1, 1], [], []>} : vector<16x32xbf16>, vector<32x128xbf16>, vector<16x128xf32> -> vector<16x128xf32>
    %126 = vector.extract_strided_slice %10 {offsets = [3, 0], sizes = [1, 128], strides = [1, 1]} : vector<16x128xf32> to vector<1x128xf32>
    %127 = vector.broadcast %126 : vector<1x128xf32> to vector<16x128xf32>
    %128 = arith.addf %125, %127 : vector<16x128xf32>
    %129 = arith.addf %8, %128 : vector<16x128xf32>
    %130 = vector.extract_strided_slice %10 {offsets = [4, 0], sizes = [1, 128], strides = [1, 1]} : vector<16x128xf32> to vector<1x128xf32>
    %131 = vector.extract_strided_slice %10 {offsets = [5, 0], sizes = [1, 128], strides = [1, 1]} : vector<16x128xf32> to vector<1x128xf32>
    %cst_38 = arith.constant dense<0.000000e+00> : vector<16xf32>
    %132 = vector.multi_reduction <add>, %129, %cst_38 [1] : vector<16x128xf32> to vector<16xf32>
    %133 = vector.shape_cast %132 : vector<16xf32> to vector<16x1xf32>
    %cst_39 = arith.constant 3.125000e-02 : f32
    %134 = vector.broadcast %cst_39 : f32 to vector<16x1xf32>
    %135 = arith.mulf %133, %134 : vector<16x1xf32>
    %136 = vector.broadcast %135 : vector<16x1xf32> to vector<16x128xf32>
    %137 = arith.subf %129, %136 : vector<16x128xf32>
    %138 = vector.broadcast %4 : vector<1x128xf32> to vector<16x128xf32>
    %139 = arith.mulf %137, %138 : vector<16x128xf32>
    %140 = arith.mulf %139, %139 : vector<16x128xf32>
    %cst_40 = arith.constant dense<0.000000e+00> : vector<16xf32>
    %141 = vector.multi_reduction <add>, %140, %cst_40 [1] : vector<16x128xf32> to vector<16xf32>
    %142 = vector.shape_cast %141 : vector<16xf32> to vector<16x1xf32>
    %cst_41 = arith.constant 3.125000e-02 : f32
    %143 = vector.broadcast %cst_41 : f32 to vector<16x1xf32>
    %144 = arith.mulf %142, %143 : vector<16x1xf32>
    %cst_42 = arith.constant 9.99999996E-13 : f32
    %145 = vector.broadcast %cst_42 : f32 to vector<16x1xf32>
    %146 = arith.addf %144, %145 : vector<16x1xf32>
    %147 = math.rsqrt %146 : vector<16x1xf32>
    %148 = vector.broadcast %147 : vector<16x1xf32> to vector<16x128xf32>
    %149 = arith.mulf %139, %148 : vector<16x128xf32>
    %150 = vector.broadcast %130 : vector<1x128xf32> to vector<16x128xf32>
    %151 = arith.mulf %149, %150 : vector<16x128xf32>
    %152 = vector.broadcast %131 : vector<1x128xf32> to vector<16x128xf32>
    %153 = arith.addf %151, %152 : vector<16x128xf32>
    %154 = arith.truncf %153 : vector<16x128xf32> to vector<16x128xbf16>
    %c0_43 = arith.constant 0 : index
    %c0_44 = arith.constant 0 : index
    %c512 = arith.constant 512 : index
    %155 = vector.load %arg4[%c0_43, %c0_44, %c512] : memref<1x128x768xbf16, #tpu.memory_space<vmem>>, vector<1x128x128xbf16>
    %156 = vector.shape_cast %155 : vector<1x128x128xbf16> to vector<128x128xbf16>
    %cst_45 = arith.constant dense<0.000000e+00> : vector<16x128xf32>
    %157 = tpu.matmul %154, %156, %cst_45 {dimension_numbers = #tpu.dot_dimension_numbers<[1], [0], [0], [1], [0, 0, 1, 1], [], []>} : vector<16x128xbf16>, vector<128x128xbf16>, vector<16x128xf32> -> vector<16x128xf32>
    %158 = vector.extract_strided_slice %10 {offsets = [6, 0], sizes = [1, 128], strides = [1, 1]} : vector<16x128xf32> to vector<1x128xf32>
    %159 = vector.broadcast %158 : vector<1x128xf32> to vector<16x128xf32>
    %160 = arith.addf %157, %159 : vector<16x128xf32>
    %161 = arith.mulf %160, %160 : vector<16x128xf32>
    %162 = arith.mulf %160, %161 : vector<16x128xf32>
    %cst_46 = arith.constant 4.471500e-02 : f32
    %163 = vector.broadcast %cst_46 : f32 to vector<16x128xf32>
    %164 = arith.mulf %163, %162 : vector<16x128xf32>
    %165 = arith.addf %160, %164 : vector<16x128xf32>
    %cst_47 = arith.constant 0.797884583 : f32
    %166 = vector.broadcast %cst_47 : f32 to vector<16x128xf32>
    %167 = arith.mulf %166, %165 : vector<16x128xf32>
    %168 = math.tanh %167 : vector<16x128xf32>
    %cst_48 = arith.constant 1.000000e+00 : f32
    %169 = vector.broadcast %cst_48 : f32 to vector<16x128xf32>
    %170 = arith.addf %169, %168 : vector<16x128xf32>
    %cst_49 = arith.constant 5.000000e-01 : f32
    %171 = vector.broadcast %cst_49 : f32 to vector<16x128xf32>
    %172 = arith.mulf %171, %170 : vector<16x128xf32>
    %173 = arith.mulf %160, %172 : vector<16x128xf32>
    %174 = arith.truncf %173 : vector<16x128xf32> to vector<16x128xbf16>
    %c0_50 = arith.constant 0 : index
    %c0_51 = arith.constant 0 : index
    %c640 = arith.constant 640 : index
    %175 = vector.load %arg4[%c0_50, %c0_51, %c640] : memref<1x128x768xbf16, #tpu.memory_space<vmem>>, vector<1x128x128xbf16>
    %176 = vector.shape_cast %175 : vector<1x128x128xbf16> to vector<128x128xbf16>
    %cst_52 = arith.constant dense<0.000000e+00> : vector<16x128xf32>
    %177 = tpu.matmul %174, %176, %cst_52 {dimension_numbers = #tpu.dot_dimension_numbers<[1], [0], [0], [1], [0, 0, 1, 1], [], []>} : vector<16x128xbf16>, vector<128x128xbf16>, vector<16x128xf32> -> vector<16x128xf32>
    %178 = vector.extract_strided_slice %10 {offsets = [7, 0], sizes = [1, 128], strides = [1, 1]} : vector<16x128xf32> to vector<1x128xf32>
    %179 = vector.broadcast %178 : vector<1x128xf32> to vector<16x128xf32>
    %180 = arith.addf %177, %179 : vector<16x128xf32>
    %181 = arith.addf %153, %180 : vector<16x128xf32>
    %182 = vector.extract_strided_slice %10 {offsets = [8, 0], sizes = [1, 128], strides = [1, 1]} : vector<16x128xf32> to vector<1x128xf32>
    %183 = vector.extract_strided_slice %10 {offsets = [9, 0], sizes = [1, 128], strides = [1, 1]} : vector<16x128xf32> to vector<1x128xf32>
    %cst_53 = arith.constant dense<0.000000e+00> : vector<16xf32>
    %184 = vector.multi_reduction <add>, %181, %cst_53 [1] : vector<16x128xf32> to vector<16xf32>
    %185 = vector.shape_cast %184 : vector<16xf32> to vector<16x1xf32>
    %cst_54 = arith.constant 3.125000e-02 : f32
    %186 = vector.broadcast %cst_54 : f32 to vector<16x1xf32>
    %187 = arith.mulf %185, %186 : vector<16x1xf32>
    %188 = vector.broadcast %187 : vector<16x1xf32> to vector<16x128xf32>
    %189 = arith.subf %181, %188 : vector<16x128xf32>
    %190 = vector.broadcast %4 : vector<1x128xf32> to vector<16x128xf32>
    %191 = arith.mulf %189, %190 : vector<16x128xf32>
    %192 = arith.mulf %191, %191 : vector<16x128xf32>
    %cst_55 = arith.constant dense<0.000000e+00> : vector<16xf32>
    %193 = vector.multi_reduction <add>, %192, %cst_55 [1] : vector<16x128xf32> to vector<16xf32>
    %194 = vector.shape_cast %193 : vector<16xf32> to vector<16x1xf32>
    %cst_56 = arith.constant 3.125000e-02 : f32
    %195 = vector.broadcast %cst_56 : f32 to vector<16x1xf32>
    %196 = arith.mulf %194, %195 : vector<16x1xf32>
    %cst_57 = arith.constant 9.99999996E-13 : f32
    %197 = vector.broadcast %cst_57 : f32 to vector<16x1xf32>
    %198 = arith.addf %196, %197 : vector<16x1xf32>
    %199 = math.rsqrt %198 : vector<16x1xf32>
    %200 = vector.broadcast %199 : vector<16x1xf32> to vector<16x128xf32>
    %201 = arith.mulf %191, %200 : vector<16x128xf32>
    %202 = vector.broadcast %182 : vector<1x128xf32> to vector<16x128xf32>
    %203 = arith.mulf %201, %202 : vector<16x128xf32>
    %204 = vector.broadcast %183 : vector<1x128xf32> to vector<16x128xf32>
    %205 = arith.addf %203, %204 : vector<16x128xf32>
    %c0_58 = arith.constant 0 : index
    %c0_59 = arith.constant 0 : index
    %206 = vector.load %arg7[%c0_58, %c0_59] : memref<16x128xf32, #tpu.memory_space<vmem>>, vector<16x128xf32>
    tpu.vector_store %arg7[%c0_58, %c0_59], %205 {strides = array<i32>} : memref<16x128xf32, #tpu.memory_space<vmem>>, vector<16x128xf32>,
    %c1_i32 = arith.constant 1 : i32
    %207 = arith.cmpi eq, %arg0, %c1_i32 : i32
    %208 = arith.extui %207 : i1 to i32
    %c0_i32_60 = arith.constant 0 : i32
    %209 = arith.cmpi ne, %208, %c0_i32_60 : i32
    scf.if %209 {
      %c0_61 = arith.constant 0 : index
      %c0_62 = arith.constant 0 : index
      %210 = vector.load %arg3[%c0_61, %c0_62] : memref<2x16xf32, #tpu.memory_space<vmem>>, vector<2x16xf32>
      %cst_63 = arith.constant dense<0.000000e+00> : vector<2x128xf32>
      %211 = tpu.matmul %210, %205, %cst_63 {dimension_numbers = #tpu.dot_dimension_numbers<[1], [0], [0], [1], [0, 0, 1, 1], [], []>} : vector<2x16xf32>, vector<16x128xf32>, vector<2x128xf32> -> vector<2x128xf32>
      %c0_64 = arith.constant 0 : index
      %c0_65 = arith.constant 0 : index
      %212 = vector.load %arg6[%c0_64, %c0_65] : memref<2x128xf32, #tpu.memory_space<vmem>>, vector<2x128xf32>
      tpu.vector_store %arg6[%c0_64, %c0_65], %211 {strides = array<i32>} : memref<2x128xf32, #tpu.memory_space<vmem>>, vector<2x128xf32>,
    } else {
    }
    return
  }
  func.func @transform_0(%arg0: i32) -> (i32, i32) {
    %c0_i32 = arith.constant 0 : i32
    %c0_i32_0 = arith.constant 0 : i32
    %c0_i32_1 = arith.constant 0 : i32
    return %c0_i32, %c0_i32_0 : i32, i32
  }
  func.func @transform_1(%arg0: i32) -> (i32, i32, i32) {
    %c0_i32 = arith.constant 0 : i32
    %c0_i32_0 = arith.constant 0 : i32
    %c0_i32_1 = arith.constant 0 : i32
    %c0_i32_2 = arith.constant 0 : i32
    return %c0_i32, %c0_i32_0, %c0_i32_1 : i32, i32, i32
  }
  func.func @transform_2(%arg0: i32) -> (i32, i32) {
    %c0_i32 = arith.constant 0 : i32
    %c0_i32_0 = arith.constant 0 : i32
    %c0_i32_1 = arith.constant 0 : i32
    return %c0_i32, %c0_i32_0 : i32, i32
  }
  func.func @transform_3(%arg0: i32) -> (i32, i32, i32) {
    %c0_i32 = arith.constant 0 : i32
    %c0_i32_0 = arith.constant 0 : i32
    %c0_i32_1 = arith.constant 0 : i32
    return %arg0, %c0_i32, %c0_i32_0 : i32, i32, i32
  }
  func.func @transform_4(%arg0: i32) -> (i32, i32, i32) {
    %c0_i32 = arith.constant 0 : i32
    %c0_i32_0 = arith.constant 0 : i32
    %c0_i32_1 = arith.constant 0 : i32
    return %arg0, %c0_i32, %c0_i32_0 : i32, i32, i32
  }
  func.func @transform_5(%arg0: i32) -> (i32, i32) {
    %c0_i32 = arith.constant 0 : i32
    %c0_i32_0 = arith.constant 0 : i32
    %c0_i32_1 = arith.constant 0 : i32
    return %c0_i32, %c0_i32_0 : i32, i32
  }
}

</mosaic_0001>

<llo_original>
// kernel: tpu_custom_call.1
$region0: #{tpu_custom_call.1}
  #allocation0 [shape = 'u32[]', space=smem, size = 0x4, offset = 0x4, fixed_abs, tag = 'smem constant byte address 0x4 - core index']
  #allocation1 [shape = 'u32[144,128]{1,0:T(1,128)}', space=vmem, size = 0x12000, scoped, tag = 'internal scratch']
  #allocation2 [shape = 'f32[16,128]{1,0:T(8,128)}', space=vmem, size = 0x2000, scoped, tag = 'scratch operand']
  %s0 = inlined_call_operand.hbm [shape: f32[16,128], index: 0, kind: input, shape index: {}]
  %s1 = inlined_call_operand.vmem [shape: f32[2,1,8], index: 1, kind: input, shape index: {}]
  %s2 = inlined_call_operand.vmem [shape: f32[2,16], index: 2, kind: input, shape index: {}]
  %s3 = inlined_call_operand.hbm [shape: bf16[2,128,768], index: 3, kind: input, shape index: {}]
  %s4 = inlined_call_operand.hbm [shape: f32[2,16,128], index: 4, kind: input, shape index: {}]
  %s5 = inlined_call_operand.hbm [shape: f32[2,128], index: 5, kind: output, shape index: {}]
  %s6 = sld [smem:[#allocation0]]
  $region73: #{tpu_custom_call.1} parent=0
    _
  %s8 = ssub.s32 1, %s6
  %s9 = scalar_select 0, %s8, %s6
  $region1: #{tpu_custom_call.1} parent=0
    #allocation3 [shape = 'u8[8192]{0}', space=vmem, size = 0x2000, scoped, tag = 'input window, operand 0, single buffered']
    #allocation4 [shape = 's32[2]{0}', space=sflag, size = 0x8, scoped, tag = 'scoped memory for tpu_custom_call.1']
    #allocation5 [shape = 's32[2]{0}', space=sflag, size = 0x8, scoped, tag = 'scoped memory for tpu_custom_call.1']
    #allocation6 [shape = 'u8[393216]{0}', space=vmem, size = 0x60000, scoped, tag = 'input window, operand 3']
    #allocation7 [shape = 's32[2]{0}', space=sflag, size = 0x8, scoped, tag = 'scoped memory for tpu_custom_call.1']
    #allocation8 [shape = 'u8[16384]{0}', space=vmem, size = 0x4000, scoped, tag = 'input window, operand 4']
    #allocation9 [shape = 'u8[1024]{0}', space=vmem, size = 0x400, scoped, tag = 'output window, operand 0, single buffered']
    %10 = vsyncpa [#allocation4], 0
    %11 = vsyncpa [#allocation7], 0
    %s12 = scalar_lea.sflag [#allocation7], 1
    %13 = vsyncpa %s12, 0
    %14 = vsyncpa [#allocation5], 0
    loop: start=0, step=1, limit=4
    $region2: #{tpu_custom_call.1} parent=1 // loop_pre_header
      _
    $region3: #{tpu_custom_call.1} parent=1 // loop_header
      %s16 = sphi 0, %s20
      %p17 = scmp.ge.s32.totalorder %s16, 4
      %s24 = sphi 0, %s24
      %s26 = sphi 0, %s24
      %s27 = sphi 0, %s26
      %s41 = sphi 0, %s27
      %s45 = sphi 0, %s45
      %s47 = sphi 0, %s45
      %s48 = sphi 0, %s47
      %s62 = sphi 0, %s48
      %s66 = sphi 0, %s66
      %s68 = sphi 0, %s66
      %s69 = sphi 0, %s68
      %s83 = sphi 0, %s69
      %s89 = sphi 0, %s91
      %s92 = sphi 0, %s89
      %s93 = sphi 0, %s92
      %s109 = sphi 0, %s93
      %s115 = sphi 0, %s117
      %s118 = sphi 0, %s115
      %s119 = sphi 0, %s118
      %s135 = sphi 0, %s119
      %s139 = sphi 0, %s139
      %s141 = sphi 0, %s139
      %s142 = sphi 0, %s141
      %s156 = sphi 0, %s142
    $region4: #{tpu_custom_call.1} parent=1 // loop_header_branch
      %19 = sbr.rel (%p17) target = $region8
    $region5: #{tpu_custom_call.1} parent=1 // loop_body
      %s21 = ssub.s32 %s16, 1
      %s22 = ssub.s32 %s16, 2
      %s23 = sadd.s32 %s16, 1
      %s25 = sadd.s32 %s24, 1
      %p28 = scmp.eq.s32.totalorder %s16, 1
      %p29 = scmp.ne.s32.totalorder %s24, %s26
      %p30 = scmp.eq.s32.totalorder %s16, 0
      %p31 = por %p29, %p30
      %p32 = scmp.ne.s32.totalorder %s24, %s26
      %p33 = scmp.eq.s32.totalorder %s21, 1
      %p34 = por %p32, %p33
      %p35 = scmp.ne.s32.totalorder %s26, %s27
      %p36 = scmp.eq.s32.totalorder %s21, 0
      %p37 = por %p35, %p36
      %p38 = scmp.ne.s32.totalorder %s26, %s27
      %p39 = scmp.eq.s32.totalorder %s22, 1
      %p40 = por %p38, %p39
      %p42 = scmp.ne.s32.totalorder %s27, %s41
      %p43 = scmp.eq.s32.totalorder %s22, 0
      %p44 = por %p42, %p43
      %s46 = sadd.s32 %s45, 1
      %p49 = scmp.eq.s32.totalorder %s16, 1
      %p50 = scmp.ne.s32.totalorder %s45, %s47
      %p51 = scmp.eq.s32.totalorder %s16, 0
      %p52 = por %p50, %p51
      %p53 = scmp.ne.s32.totalorder %s45, %s47
      %p54 = scmp.eq.s32.totalorder %s21, 1
      %p55 = por %p53, %p54
      %p56 = scmp.ne.s32.totalorder %s47, %s48
      %p57 = scmp.eq.s32.totalorder %s21, 0
      %p58 = por %p56, %p57
      %p59 = scmp.ne.s32.totalorder %s47, %s48
      %p60 = scmp.eq.s32.totalorder %s22, 1
      %p61 = por %p59, %p60
      %p63 = scmp.ne.s32.totalorder %s48, %s62
      %p64 = scmp.eq.s32.totalorder %s22, 0
      %p65 = por %p63, %p64
      %s67 = sadd.s32 %s66, 1
      %p70 = scmp.eq.s32.totalorder %s16, 1
      %p71 = scmp.ne.s32.totalorder %s66, %s68
      %p72 = scmp.eq.s32.totalorder %s16, 0
      %p73 = por %p71, %p72
      %p74 = scmp.ne.s32.totalorder %s66, %s68
      %p75 = scmp.eq.s32.totalorder %s21, 1
      %p76 = por %p74, %p75
      %p77 = scmp.ne.s32.totalorder %s68, %s69
      %p78 = scmp.eq.s32.totalorder %s21, 0
      %p79 = por %p77, %p78
      %p80 = scmp.ne.s32.totalorder %s68, %s69
      %p81 = scmp.eq.s32.totalorder %s22, 1
      %p82 = por %p80, %p81
      %p84 = scmp.ne.s32.totalorder %s69, %s83
      %p85 = scmp.eq.s32.totalorder %s22, 0
      %p86 = por %p84, %p85
      %s87 = ssub.s32 %s16, %s23
      %p88 = scmp.eq.s32.totalorder %s87, 0
      %s90 = sadd.s32 %s89, 1
      %s91 = scalar_select %p88, %s89, %s90
      %p94 = pneg %p88
      %p95 = scmp.eq.s32.totalorder %s16, 1
      %p96 = por %p94, %p95
      %p97 = scmp.ne.s32.totalorder %s89, %s92
      %p98 = scmp.eq.s32.totalorder %s16, 0
      %p99 = por %p97, %p98
      %p100 = scmp.ne.s32.totalorder %s89, %s92
      %p101 = scmp.eq.s32.totalorder %s21, 1
      %p102 = por %p100, %p101
      %p103 = scmp.ne.s32.totalorder %s92, %s93
      %p104 = scmp.eq.s32.totalorder %s21, 0
      %p105 = por %p103, %p104
      %p106 = scmp.ne.s32.totalorder %s92, %s93
      %p107 = scmp.eq.s32.totalorder %s22, 1
      %p108 = por %p106, %p107
      %p110 = scmp.ne.s32.totalorder %s93, %s109
      %p111 = scmp.eq.s32.totalorder %s22, 0
      %p112 = por %p110, %p111
      %s113 = ssub.s32 %s16, %s23
      %p114 = scmp.eq.s32.totalorder %s113, 0
      %s116 = sadd.s32 %s115, 1
      %s117 = scalar_select %p114, %s115, %s116
      %p120 = pneg %p114
      %p121 = scmp.eq.s32.totalorder %s16, 1
      %p122 = por %p120, %p121
      %p123 = scmp.ne.s32.totalorder %s115, %s118
      %p124 = scmp.eq.s32.totalorder %s16, 0
      %p125 = por %p123, %p124
      %p126 = scmp.ne.s32.totalorder %s115, %s118
      %p127 = scmp.eq.s32.totalorder %s21, 1
      %p128 = por %p126, %p127
      %p129 = scmp.ne.s32.totalorder %s118, %s119
      %p130 = scmp.eq.s32.totalorder %s21, 0
      %p131 = por %p129, %p130
      %p132 = scmp.ne.s32.totalorder %s118, %s119
      %p133 = scmp.eq.s32.totalorder %s22, 1
      %p134 = por %p132, %p133
      %p136 = scmp.ne.s32.totalorder %s119, %s135
      %p137 = scmp.eq.s32.totalorder %s22, 0
      %p138 = por %p136, %p137
      %s140 = sadd.s32 %s139, 1
      %p143 = scmp.eq.s32.totalorder %s16, 1
      %p144 = scmp.ne.s32.totalorder %s139, %s141
      %p145 = scmp.eq.s32.totalorder %s16, 0
      %p146 = por %p144, %p145
      %p147 = scmp.ne.s32.totalorder %s139, %s141
      %p148 = scmp.eq.s32.totalorder %s21, 1
      %p149 = por %p147, %p148
      %p150 = scmp.ne.s32.totalorder %s141, %s142
      %p151 = scmp.eq.s32.totalorder %s21, 0
      %p152 = por %p150, %p151
      %p153 = scmp.ne.s32.totalorder %s141, %s142
      %p154 = scmp.eq.s32.totalorder %s22, 1
      %p155 = por %p153, %p154
      %p157 = scmp.ne.s32.totalorder %s142, %s156
      %p158 = scmp.eq.s32.totalorder %s22, 0
      %p159 = por %p157, %p158
      %p160 = scmp.le.s32.totalorder 1, %s16
      %p161 = scmp.lt.s32.totalorder %s16, 3
      %p162 = pnand %p160, %p161
      %p163 = pneg %p162
      // Predicated region
      $region9: #{tpu_custom_call.1} parent=5 // pred_check
        _
      $region10: #{tpu_custom_call.1} parent=5 // pred_check_branch
        %165 = sbr.rel (%p162) target = $region12
      $region11: #{tpu_custom_call.1} parent=5 // pred_region
        %s166 = ssub.s32 %s16, 1
        // Predicated region
        $region13: #{tpu_custom_call.1} parent=11 // pred_check
          %p167 = pneg %p37
        $region14: #{tpu_custom_call.1} parent=11 // pred_check_branch
          %169 = sbr.rel (%p167) target = $region16
        $region15: #{tpu_custom_call.1} parent=11 // pred_region
          %s171 = ssub.s32 256, 256
          %172 = vsyncadd [#allocation4], %s171
          %s173 = sshll.u32 [#allocation3], 4
          %s174 = int_to_ptr.vmem [resolvable:$true] %s173
          %179 = dma.hbm_to_vmem [thread:$0]  %s0, 256, %s174, [#allocation4], 128, 128, 8
        $region16: #{tpu_custom_call.1} parent=11 // pred_fallthru
          _
        // Predicated region
        $region17: #{tpu_custom_call.1} parent=11 // pred_check
          %p180 = pneg %p58
        $region18: #{tpu_custom_call.1} parent=11 // pred_check_branch
          %182 = sbr.rel (%p180) target = $region20
        $region19: #{tpu_custom_call.1} parent=11 // pred_region
          _
        $region20: #{tpu_custom_call.1} parent=11 // pred_fallthru
          _
        // Predicated region
        $region21: #{tpu_custom_call.1} parent=11 // pred_check
          %p183 = pneg %p79
        $region22: #{tpu_custom_call.1} parent=11 // pred_check_branch
          %185 = sbr.rel (%p183) target = $region24
        $region23: #{tpu_custom_call.1} parent=11 // pred_region
          _
        $region24: #{tpu_custom_call.1} parent=11 // pred_fallthru
          _
      $region12: #{tpu_custom_call.1} parent=5 // pred_fallthru
        _
      %p186 = scmp.lt.s32.totalorder %s16, 2
      // Predicated region
      $region25: #{tpu_custom_call.1} parent=5 // pred_check
        %p187 = pneg %p186
      $region26: #{tpu_custom_call.1} parent=5 // pred_check_branch
        %189 = sbr.rel (%p187) target = $region28
      $region27: #{tpu_custom_call.1} parent=5 // pred_region
        // Predicated region
        $region29: #{tpu_custom_call.1} parent=27 // pred_check
          %p190 = pneg %p99
        $region30: #{tpu_custom_call.1} parent=27 // pred_check_branch
          %192 = sbr.rel (%p190) target = $region32
        $region31: #{tpu_custom_call.1} parent=27 // pred_region
          %s193 = sand.u32 %s16, 1
          %s194 = scalar_lea.sflag [#allocation7], %s193
          %s195 = sand.u32 %s89, 1
          %s196 = smul.addr %s195, 384
          %s197 = scalar_lea.vmem [#allocation6], %s196
          %s199 = ssub.s32 6144, 6144
          %200 = vsyncadd %s194, %s199
          %s201 = smul.addr %s16, 96
          %s202 = smul.addr %s201, 64
          %s203 = scalar_lea.hbm %s3, %s202
          %s204 = sshll.u32 %s197, 4
          %s205 = int_to_ptr.vmem [resolvable:$true] %s204
          %210 = dma.hbm_to_vmem [thread:$0]  %s203, 6144, %s205, %s194, 384, 384, 24
        $region32: #{tpu_custom_call.1} parent=27 // pred_fallthru
          _
        // Predicated region
        $region33: #{tpu_custom_call.1} parent=27 // pred_check
          %p211 = pneg %p125
        $region34: #{tpu_custom_call.1} parent=27 // pred_check_branch
          %213 = sbr.rel (%p211) target = $region36
        $region35: #{tpu_custom_call.1} parent=27 // pred_region
          %s214 = sand.u32 %s16, 1
          %s215 = scalar_lea.sflag [#allocation7], %s214
          %s216 = sand.u32 %s115, 1
          %s217 = smul.addr %s216, 16
          %s218 = scalar_lea.vmem [#allocation8], %s217
          %s220 = ssub.s32 256, 256
          %221 = vsyncadd %s215, %s220
          %s222 = smul.addr %s16, 2
          %s223 = smul.addr %s222, 128
          %s224 = scalar_lea.hbm %s4, %s223
          %s225 = sshll.u32 %s218, 4
          %s226 = int_to_ptr.vmem [resolvable:$true] %s225
          %231 = dma.hbm_to_vmem [thread:$0]  %s224, 256, %s226, %s215, 128, 128, 8
        $region36: #{tpu_custom_call.1} parent=27 // pred_fallthru
          _
      $region28: #{tpu_custom_call.1} parent=5 // pred_fallthru
        _
      %p232 = scmp.le.s32.totalorder 1, %s16
      %p233 = scmp.lt.s32.totalorder %s16, 3
      %p234 = pnand %p232, %p233
      %p235 = pneg %p234
      // Predicated region
      $region37: #{tpu_custom_call.1} parent=5 // pred_check
        _
      $region38: #{tpu_custom_call.1} parent=5 // pred_check_branch
        %237 = sbr.rel (%p234) target = $region40
      $region39: #{tpu_custom_call.1} parent=5 // pred_region
        %s238 = ssub.s32 %s16, 1
        // Predicated region
        $region41: #{tpu_custom_call.1} parent=39 // pred_check
          %p239 = pneg %p37
        $region42: #{tpu_custom_call.1} parent=39 // pred_check_branch
          %241 = sbr.rel (%p239) target = $region44
        $region43: #{tpu_custom_call.1} parent=39 // pred_region
          %242 = dma.done [#allocation4], 256
        $region44: #{tpu_custom_call.1} parent=39 // pred_fallthru
          _
        %s243 = sand.u32 %s21, 1
        %s244 = scalar_lea.sflag [#allocation7], %s243
        %s245 = sand.u32 %s92, 1
        %s246 = smul.addr %s245, 384
        %s247 = scalar_lea.vmem [#allocation6], %s246
        // Predicated region
        $region45: #{tpu_custom_call.1} parent=39 // pred_check
          %p248 = pneg %p105
        $region46: #{tpu_custom_call.1} parent=39 // pred_check_branch
          %250 = sbr.rel (%p248) target = $region48
        $region47: #{tpu_custom_call.1} parent=39 // pred_region
          %251 = dma.done %s244, 6144
        $region48: #{tpu_custom_call.1} parent=39 // pred_fallthru
          _
        %s252 = sand.u32 %s21, 1
        %s253 = scalar_lea.sflag [#allocation7], %s252
        %s254 = sand.u32 %s118, 1
        %s255 = smul.addr %s254, 16
        %s256 = scalar_lea.vmem [#allocation8], %s255
        // Predicated region
        $region49: #{tpu_custom_call.1} parent=39 // pred_check
          %p257 = pneg %p131
        $region50: #{tpu_custom_call.1} parent=39 // pred_check_branch
          %259 = sbr.rel (%p257) target = $region52
        $region51: #{tpu_custom_call.1} parent=39 // pred_region
          %260 = dma.done %s253, 256
        $region52: #{tpu_custom_call.1} parent=39 // pred_fallthru
          _
        %p261 = pneg %p37
        %p262 = pneg %p34
        %p263 = pneg %p58
        %p264 = pneg %p55
        %p265 = pneg %p79
        %p266 = pneg %p76
        %s267 = sand.u32 %s21, 1
        %s268 = scalar_lea.sflag [#allocation7], %s267
        %s269 = sand.u32 %s92, 1
        %s270 = smul.addr %s269, 384
        %s271 = scalar_lea.vmem [#allocation6], %s270
        %p272 = pneg %p105
        %p273 = pneg %p102
        %s274 = sand.u32 %s21, 1
        %s275 = scalar_lea.sflag [#allocation7], %s274
        %s276 = sand.u32 %s118, 1
        %s277 = smul.addr %s276, 16
        %s278 = scalar_lea.vmem [#allocation8], %s277
        %p279 = pneg %p131
        %p280 = pneg %p128
        %p281 = pneg %p152
        %p282 = pneg %p149
        %v284 = vlaneseq
        %v285 = vand.u32 %v284, 127
        %vm286 = vcmp.lt.s32.totalorder %v285, 32
        %v287 = vsel %vm286, 1, 0
        %v288 = vcvt.s32.f32 %v287
        %p289 = scmp.eq.s32.totalorder %s21, 0
        // Predicated region
        $region53: #{tpu_custom_call.1} parent=39 // pred_check
          %p290 = pneg %p289
        $region54: #{tpu_custom_call.1} parent=39 // pred_check_branch
          %292 = sbr.rel (%p290) target = $region56
        $region55: #{tpu_custom_call.1} parent=39 // pred_region
          %v293 = vld [vmem:[#allocation3] sm:$0xff]
          %v294 = vld [vmem:[#allocation3 + $0x8] sm:$0xff]
          %295 = vst [vmem:[#allocation2] sm:$0xff] %v293
          %296 = vst [vmem:[#allocation2 + $0x8] sm:$0xff] %v294
        $region56: #{tpu_custom_call.1} parent=39 // pred_fallthru
          _
        %v297 = vld [vmem:[#allocation2] sm:$0xff]
        %v298 = vld [vmem:[#allocation2 + $0x8] sm:$0xff]
        %v299 = vld [vmem:[%s256] sm:$0xff]
        %v300 = vld [vmem:[%s256 + $0x8] sm:$0xff]
        %v301 = vld [vmem:[%s1] sm:$0x1]
        %v302 = vld [vmem:[%s1 + $0x1] sm:$0x1]
        %v303 = vpack.c.bf16 %v298, %v297
        %v304 = vld [vmem:[%s247] sm:$0xff]
        %v305 = vld [vmem:[%s247 + $0x8] sm:$0xf]
        %v306 = vld [vmem:[%s247 + $0x18] sm:$0xff]
        %v307 = vld [vmem:[%s247 + $0x20] sm:$0xf]
        %v308 = vld [vmem:[%s247 + $0x30] sm:$0xff]
        %v309 = vld [vmem:[%s247 + $0x38] sm:$0xf]
        %v310 = vld [vmem:[%s247 + $0x48] sm:$0xff]
        %v311 = vld [vmem:[%s247 + $0x50] sm:$0xf]
        %v312 = vld [vmem:[%s247 + $0x60] sm:$0xff]
        %v313 = vld [vmem:[%s247 + $0x68] sm:$0xf]
        %v314 = vld [vmem:[%s247 + $0x78] sm:$0xff]
        %v315 = vld [vmem:[%s247 + $0x80] sm:$0xf]
        %v316 = vld [vmem:[%s247 + $0x90] sm:$0xff]
        %v317 = vld [vmem:[%s247 + $0x98] sm:$0xf]
        %v318 = vld [vmem:[%s247 + $0xa8] sm:$0xff]
        %v319 = vld [vmem:[%s247 + $0xb0] sm:$0xf]
        %v320 = vld [vmem:[%s247 + $0xc0] sm:$0xff]
        %v321 = vld [vmem:[%s247 + $0xc8] sm:$0xf]
        %v322 = vld [vmem:[%s247 + $0xd8] sm:$0xff]
        %v323 = vld [vmem:[%s247 + $0xe0] sm:$0xf]
        %v324 = vld [vmem:[%s247 + $0xf0] sm:$0xff]
        %v325 = vld [vmem:[%s247 + $0xf8] sm:$0xf]
        %v326 = vld [vmem:[%s247 + $0x108] sm:$0xff]
        %v327 = vld [vmem:[%s247 + $0x110] sm:$0xf]
        %v328 = vld [vmem:[%s247 + $0x120] sm:$0xff]
        %v329 = vld [vmem:[%s247 + $0x128] sm:$0xf]
        %v330 = vld [vmem:[%s247 + $0x138] sm:$0xff]
        %v331 = vld [vmem:[%s247 + $0x140] sm:$0xf]
        %v332 = vld [vmem:[%s247 + $0x150] sm:$0xff]
        %v333 = vld [vmem:[%s247 + $0x158] sm:$0xf]
        %v334 = vld [vmem:[%s247 + $0x168] sm:$0xff]
        %v335 = vld [vmem:[%s247 + $0x170] sm:$0xf]
        %v368 = vunpack.c.l.b16 %v304
        %v369 = vunpack.c.h.b16 %v304
        %v370 = vunpack.c.l.b16 %v305
        %v371 = vunpack.c.l.b16 %v306
        %v372 = vunpack.c.h.b16 %v306
        %v373 = vunpack.c.l.b16 %v307
        %v374 = vunpack.c.l.b16 %v308
        %v375 = vunpack.c.h.b16 %v308
        %v376 = vunpack.c.l.b16 %v309
        %v377 = vunpack.c.l.b16 %v310
        %v378 = vunpack.c.h.b16 %v310
        %v379 = vunpack.c.l.b16 %v311
        %v380 = vunpack.c.l.b16 %v312
        %v381 = vunpack.c.h.b16 %v312
        %v382 = vunpack.c.l.b16 %v313
        %v383 = vunpack.c.l.b16 %v314
        %v384 = vunpack.c.h.b16 %v314
        %v385 = vunpack.c.l.b16 %v315
        %v386 = vunpack.c.l.b16 %v316
        %v387 = vunpack.c.h.b16 %v316
        %v388 = vunpack.c.l.b16 %v317
        %v389 = vunpack.c.l.b16 %v318
        %v390 = vunpack.c.h.b16 %v318
        %v391 = vunpack.c.l.b16 %v319
        %v392 = vunpack.c.l.b16 %v320
        %v393 = vunpack.c.h.b16 %v320
        %v394 = vunpack.c.l.b16 %v321
        %v395 = vunpack.c.l.b16 %v322
        %v396 = vunpack.c.h.b16 %v322
        %v397 = vunpack.c.l.b16 %v323
        %v398 = vunpack.c.l.b16 %v324
        %v399 = vunpack.c.h.b16 %v324
        %v400 = vunpack.c.l.b16 %v325
        %v401 = vunpack.c.l.b16 %v326
        %v402 = vunpack.c.h.b16 %v326
        %v403 = vunpack.c.l.b16 %v327
        %v404 = vunpack.c.l.b16 %v328
        %v405 = vunpack.c.h.b16 %v328
        %v406 = vunpack.c.l.b16 %v329
        %v407 = vunpack.c.l.b16 %v330
        %v408 = vunpack.c.h.b16 %v330
        %v409 = vunpack.c.l.b16 %v331
        %v410 = vunpack.c.l.b16 %v332
        %v411 = vunpack.c.h.b16 %v332
        %v412 = vunpack.c.l.b16 %v333
        %v413 = vunpack.c.l.b16 %v334
        %v414 = vunpack.c.h.b16 %v334
        %v415 = vunpack.c.l.b16 %v335
        %v416 = vpack.c.b16 %v371, %v368
        %v417 = vpack.c.b16 %v372, %v369
        %v418 = vpack.c.b16 %v373, %v370
        %v419 = vpack.c.b16 %v377, %v374
        %v420 = vpack.c.b16 %v378, %v375
        %v421 = vpack.c.b16 %v379, %v376
        %v422 = vpack.c.b16 %v383, %v380
        %v423 = vpack.c.b16 %v384, %v381
        %v424 = vpack.c.b16 %v385, %v382
        %v425 = vpack.c.b16 %v389, %v386
        %v426 = vpack.c.b16 %v390, %v387
        %v427 = vpack.c.b16 %v391, %v388
        %v428 = vpack.c.b16 %v395, %v392
        %v429 = vpack.c.b16 %v396, %v393
        %v430 = vpack.c.b16 %v397, %v394
        %v431 = vpack.c.b16 %v401, %v398
        %v432 = vpack.c.b16 %v402, %v399
        %v433 = vpack.c.b16 %v403, %v400
        %v434 = vpack.c.b16 %v407, %v404
        %v435 = vpack.c.b16 %v408, %v405
        %v436 = vpack.c.b16 %v409, %v406
        %v437 = vpack.c.b16 %v413, %v410
        %v438 = vpack.c.b16 %v414, %v411
        %v439 = vpack.c.b16 %v415, %v412
        %464 = vmatprep.subr.bf16.mxu0 %v417
        %465 = vmatpush1.bf16.msra.mxu0 %v416
        %466 = vmatprep.subr.bf16.mxu0 %v420
        %467 = vmatpush1.bf16.msra.mxu0 %v419
        %468 = vmatprep.subr.bf16.mxu0 %v423
        %469 = vmatpush1.bf16.msra.mxu0 %v422
        %470 = vmatprep.subr.bf16.mxu0 %v426
        %471 = vmatpush1.bf16.msra.mxu0 %v425
        %472 = vmatprep.subr.bf16.mxu0 %v429
        %473 = vmatpush1.bf16.msra.mxu0 %v428
        %474 = vmatprep.subr.bf16.mxu0 %v432
        %475 = vmatpush1.bf16.msra.mxu0 %v431
        %476 = vmatprep.subr.bf16.mxu0 %v435
        %477 = vmatpush1.bf16.msra.mxu0 %v434
        %478 = vmatprep.subr.bf16.mxu0 %v438
        %479 = vmatpush1.bf16.msra.mxu0 %v437
        %480 = vmatprep.subr.bf16.mxu0 0
        %481 = vmatpush1.bf16.msra.mxu0 0
        %482 = vmatprep.subr.bf16.mxu0 0
        %483 = vmatpush1.bf16.msra.mxu0 0
        %484 = vmatprep.subr.bf16.mxu0 0
        %485 = vmatpush1.bf16.msra.mxu0 0
        %486 = vmatprep.subr.bf16.mxu0 0
        %487 = vmatpush1.bf16.msra.mxu0 0
        %488 = vmatprep.subr.bf16.mxu0 0
        %489 = vmatpush1.bf16.msra.mxu0 0
        %490 = vmatprep.subr.bf16.mxu0 0
        %491 = vmatpush1.bf16.msra.mxu0 0
        %492 = vmatprep.subr.bf16.mxu0 0
        %493 = vmatpush1.bf16.msra.mxu0 0
        %494 = vmatprep.subr.bf16.mxu0 0
        %495 = vmatpush1.bf16.msra.mxu0 0
        %496 = vmatprep.mubr.bf16.mxu0 0
        %497 = vmatmul.mubr.bf16.gmra.mrb[0].mxu0 %v303
        %v498 = vpop.f32.mrb[0].mxu0
        %v499 = vadd.f32 0.0, %v498
        %v500 = vpop.f32.mrb[0].mxu0
        %v501 = vadd.f32 0.0, %v500
        %v502 = vpop.f32.mrb[0].mxu0
        %v503 = vadd.f32 0.0, %v502
        %v504 = vpop.f32.mrb[0].mxu0
        %v505 = vadd.f32 0.0, %v504
        %506 = vdwg.mxu0
        %507 = vmatprep.subr.bf16.mxu0 0
        %508 = vmatpush1.bf16.msra.mxu0 %v418
        %509 = vmatprep.subr.bf16.mxu0 0
        %510 = vmatpush1.bf16.msra.mxu0 %v421
        %511 = vmatprep.subr.bf16.mxu0 0
        %512 = vmatpush1.bf16.msra.mxu0 %v424
        %513 = vmatprep.subr.bf16.mxu0 0
        %514 = vmatpush1.bf16.msra.mxu0 %v427
        %515 = vmatprep.subr.bf16.mxu0 0
        %516 = vmatpush1.bf16.msra.mxu0 %v430
        %517 = vmatprep.subr.bf16.mxu0 0
        %518 = vmatpush1.bf16.msra.mxu0 %v433
        %519 = vmatprep.subr.bf16.mxu0 0
        %520 = vmatpush1.bf16.msra.mxu0 %v436
        %521 = vmatprep.subr.bf16.mxu0 0
        %522 = vmatpush1.bf16.msra.mxu0 %v439
        %523 = vmatprep.subr.bf16.mxu0 0
        %524 = vmatpush1.bf16.msra.mxu0 0
        %525 = vmatprep.subr.bf16.mxu0 0
        %526 = vmatpush1.bf16.msra.mxu0 0
        %527 = vmatprep.subr.bf16.mxu0 0
        %528 = vmatpush1.bf16.msra.mxu0 0
        %529 = vmatprep.subr.bf16.mxu0 0
        %530 = vmatpush1.bf16.msra.mxu0 0
        %531 = vmatprep.subr.bf16.mxu0 0
        %532 = vmatpush1.bf16.msra.mxu0 0
        %533 = vmatprep.subr.bf16.mxu0 0
        %534 = vmatpush1.bf16.msra.mxu0 0
        %535 = vmatprep.subr.bf16.mxu0 0
        %536 = vmatpush1.bf16.msra.mxu0 0
        %537 = vmatprep.subr.bf16.mxu0 0
        %538 = vmatpush1.bf16.msra.mxu0 0
        %539 = vmatprep.mubr.bf16.mxu0 0
        %540 = vmatmul.mubr.bf16.gmra.mrb[0].mxu0 %v303
        %v541 = vpop.f32.mrb[0].mxu0
        %v542 = vadd.f32 0.0, %v541
        %v543 = vpop.f32.mrb[0].mxu0
        %v544 = vpop.f32.mrb[0].mxu0
        %v545 = vadd.f32 0.0, %v544
        %v546 = vpop.f32.mrb[0].mxu0
        %547 = vdwg.mxu0
        %v548 = vlaneseq
        %v549 = vshrl.u32 %v548, 7
        %v550 = vsub.s32 0, %v549
        %v551 = vrot.slane %v299, %v550
        %v552 = vadd.f32 %v499, %v551
        %v553 = vadd.f32 %v503, %v551
        %v554 = vlaneseq
        %v555 = vshrl.u32 %v554, 7
        %v556 = vsub.s32 1, %v555
        %v557 = vrot.slane %v299, %v556
        %v558 = vadd.f32 %v501, %v557
        %v559 = vadd.f32 %v505, %v557
        %v560 = vlaneseq
        %v561 = vshrl.u32 %v560, 7
        %v562 = vsub.s32 2, %v561
        %v563 = vrot.slane %v299, %v562
        %v564 = vadd.f32 %v542, %v563
        %v565 = vadd.f32 %v545, %v563
        %vm566 = vcmask 64512
        %v568 = vsel %vm566, %v552, 0
        %v571 = vsel %vm566, %v558, 0
        %573 = vmatprep.subr.mxu0 0.0
        %574 = vmatpush1.xpose.msra.mxu0 %v571
        %575 = vmatprep.subr.mxu0 0.0
        %576 = vmatpush1.xpose.msra.mxu0 0.0
        %577 = vmatprep.subr.mxu0 0.0
        %578 = vmatpush1.xpose.msra.mxu0 0.0
        %579 = vmatprep.subr.mxu0 0.0
        %580 = vmatpush1.xpose.msra.mxu0 0.0
        %581 = vmatprep.subr.mxu0 0.0
        %582 = vmatpush1.xpose.msra.mxu0 0.0
        %583 = vmatprep.subr.mxu0 0.0
        %584 = vmatpush1.xpose.msra.mxu0 0.0
        %585 = vmatprep.subr.mxu0 0.0
        %586 = vmatpush1.xpose.msra.mxu0 0.0
        %587 = vmatprep.subr.mxu0 0.0
        %588 = vmatpush1.xpose.msra.mxu0 0.0
        %589 = vmatprep.subr.mxu0 0.0
        %590 = vmatpush1.xpose.msra.mxu0 0.0
        %591 = vmatprep.subr.mxu0 0.0
        %592 = vmatpush1.xpose.msra.mxu0 0.0
        %593 = vmatprep.subr.mxu0 0.0
        %594 = vmatpush1.xpose.msra.mxu0 0.0
        %595 = vmatprep.subr.mxu0 0.0
        %596 = vmatpush1.xpose.msra.mxu0 0.0
        %597 = vmatprep.subr.mxu0 0.0
        %598 = vmatpush1.xpose.msra.mxu0 0.0
        %599 = vmatprep.subr.mxu0 0.0
        %600 = vmatpush1.xpose.msra.mxu0 0.0
        %601 = vmatprep.subr.mxu0 0.0
        %602 = vmatpush1.xpose.msra.mxu0 0.0
        %603 = vmatprep.subr.mxu0 0.0
        %604 = vmatpush1.xpose.msra.mxu0 0.0
        %605 = vmatprep.subr.mxu0 0.0
        %606 = vmatpush1.xpose.msra.mxu0 0.0
        %607 = vmatprep.subr.mxu0 0.0
        %608 = vmatpush1.xpose.msra.mxu0 0.0
        %609 = vmatprep.subr.mxu0 0.0
        %610 = vmatpush1.xpose.msra.mxu0 0.0
        %611 = vmatprep.subr.mxu0 0.0
        %612 = vmatpush1.xpose.msra.mxu0 0.0
        %613 = vmatprep.subr.mxu0 0.0
        %614 = vmatpush1.xpose.msra.mxu0 0.0
        %615 = vmatprep.subr.mxu0 0.0
        %616 = vmatpush1.xpose.msra.mxu0 0.0
        %617 = vmatprep.subr.mxu0 0.0
        %618 = vmatpush1.xpose.msra.mxu0 0.0
        %619 = vmatprep.subr.mxu0 0.0
        %620 = vmatpush1.xpose.msra.mxu0 0.0
        %621 = vmatprep.subr.mxu0 0.0
        %622 = vmatpush1.xpose.msra.mxu0 0.0
        %623 = vmatprep.subr.mxu0 0.0
        %624 = vmatpush1.xpose.msra.mxu0 0.0
        %625 = vmatprep.subr.mxu0 0.0
        %626 = vmatpush1.xpose.msra.mxu0 0.0
        %627 = vmatprep.subr.mxu0 0.0
        %628 = vmatpush1.xpose.msra.mxu0 0.0
        %629 = vmatprep.subr.mxu0 0.0
        %630 = vmatpush1.xpose.msra.mxu0 0.0
        %631 = vmatprep.subr.mxu0 0.0
        %632 = vmatpush1.xpose.msra.mxu0 0.0
        %633 = vmatprep.subr.mxu0 0.0
        %634 = vmatpush1.xpose.msra.mxu0 0.0
        %635 = vmatprep.subr.mxu0 0.0
        %636 = vmatpush1.xpose.msra.mxu0 0.0
        %637 = vmatprep.mubr.f32.mxu0 0.0
        %638 = vmatmul.mubr.f32.gmra.mrb[0].mxu0 %v568
        %v639 = vpop.f32.mrb[0].mxu0
        %v640 = vadd.f32 0.0, %v639
        %v641 = vpop.f32.mrb[0].mxu0
        %642 = vdwg.mxu0
        %v644 = vsel %vm566, %v553, 0
        %v647 = vsel %vm566, %v559, 0
        %649 = vmatprep.subr.mxu0 0.0
        %650 = vmatpush1.xpose.msra.mxu0 %v647
        %651 = vmatprep.subr.mxu0 0.0
        %652 = vmatpush1.xpose.msra.mxu0 0.0
        %653 = vmatprep.subr.mxu0 0.0
        %654 = vmatpush1.xpose.msra.mxu0 0.0
        %655 = vmatprep.subr.mxu0 0.0
        %656 = vmatpush1.xpose.msra.mxu0 0.0
        %657 = vmatprep.subr.mxu0 0.0
        %658 = vmatpush1.xpose.msra.mxu0 0.0
        %659 = vmatprep.subr.mxu0 0.0
        %660 = vmatpush1.xpose.msra.mxu0 0.0
        %661 = vmatprep.subr.mxu0 0.0
        %662 = vmatpush1.xpose.msra.mxu0 0.0
        %663 = vmatprep.subr.mxu0 0.0
        %664 = vmatpush1.xpose.msra.mxu0 0.0
        %665 = vmatprep.subr.mxu0 0.0
        %666 = vmatpush1.xpose.msra.mxu0 0.0
        %667 = vmatprep.subr.mxu0 0.0
        %668 = vmatpush1.xpose.msra.mxu0 0.0
        %669 = vmatprep.subr.mxu0 0.0
        %670 = vmatpush1.xpose.msra.mxu0 0.0
        %671 = vmatprep.subr.mxu0 0.0
        %672 = vmatpush1.xpose.msra.mxu0 0.0
        %673 = vmatprep.subr.mxu0 0.0
        %674 = vmatpush1.xpose.msra.mxu0 0.0
        %675 = vmatprep.subr.mxu0 0.0
        %676 = vmatpush1.xpose.msra.mxu0 0.0
        %677 = vmatprep.subr.mxu0 0.0
        %678 = vmatpush1.xpose.msra.mxu0 0.0
        %679 = vmatprep.subr.mxu0 0.0
        %680 = vmatpush1.xpose.msra.mxu0 0.0
        %681 = vmatprep.subr.mxu0 0.0
        %682 = vmatpush1.xpose.msra.mxu0 0.0
        %683 = vmatprep.subr.mxu0 0.0
        %684 = vmatpush1.xpose.msra.mxu0 0.0
        %685 = vmatprep.subr.mxu0 0.0
        %686 = vmatpush1.xpose.msra.mxu0 0.0
        %687 = vmatprep.subr.mxu0 0.0
        %688 = vmatpush1.xpose.msra.mxu0 0.0
        %689 = vmatprep.subr.mxu0 0.0
        %690 = vmatpush1.xpose.msra.mxu0 0.0
        %691 = vmatprep.subr.mxu0 0.0
        %692 = vmatpush1.xpose.msra.mxu0 0.0
        %693 = vmatprep.subr.mxu0 0.0
        %694 = vmatpush1.xpose.msra.mxu0 0.0
        %695 = vmatprep.subr.mxu0 0.0
        %696 = vmatpush1.xpose.msra.mxu0 0.0
        %697 = vmatprep.subr.mxu0 0.0
        %698 = vmatpush1.xpose.msra.mxu0 0.0
        %699 = vmatprep.subr.mxu0 0.0
        %700 = vmatpush1.xpose.msra.mxu0 0.0
        %701 = vmatprep.subr.mxu0 0.0
        %702 = vmatpush1.xpose.msra.mxu0 0.0
        %703 = vmatprep.subr.mxu0 0.0
        %704 = vmatpush1.xpose.msra.mxu0 0.0
        %705 = vmatprep.subr.mxu0 0.0
        %706 = vmatpush1.xpose.msra.mxu0 0.0
        %707 = vmatprep.subr.mxu0 0.0
        %708 = vmatpush1.xpose.msra.mxu0 0.0
        %709 = vmatprep.subr.mxu0 0.0
        %710 = vmatpush1.xpose.msra.mxu0 0.0
        %711 = vmatprep.subr.mxu0 0.0
        %712 = vmatpush1.xpose.msra.mxu0 0.0
        %713 = vmatprep.mubr.f32.mxu0 0.0
        %714 = vmatmul.mubr.f32.gmra.mrb[0].mxu0 %v644
        %v715 = vpop.f32.mrb[0].mxu0
        %v716 = vadd.f32 0.0, %v715
        %v717 = vpop.f32.mrb[0].mxu0
        %718 = vdwg.mxu0
        %v719 = vmul.f32 %v640, 0.35355338
        %v720 = vmul.f32 %v716, 0.35355338
        %v723 = vlaneseq
        %v724 = vshrl.u32 %v723, 7
        %v725 = vsub.s32 0, %v724
        %v726 = vrot.slane %v301, %v725
        %v727 = vlaneseq
        %v728 = vshrl.u32 %v727, 7
        %v729 = vsub.s32 0, %v728
        %v730 = vrot.slane %v302, %v729
        %v733 = vadd.f32 %v719, %v726
        %v734 = vadd.f32 %v720, %v730
        %v735 = vsel %vm566, %v733, -inf
        %736 = vmax.xlane.f32.xlu0 %v735
        %v737 = vpop.xlane.xlu0 %736
        %v738 = vsel %vm566, %v734, -inf
        %739 = vmax.xlane.f32.xlu0 %v738
        %v740 = vpop.xlane.xlu0 %739
        %v741 = vsub.f32 %v733, %v737
        %v742 = vsub.f32 %v734, %v740
        %v743 = vmul.f32 %v741, 1.442695
        %v744 = vpow.pop %v743
        %v745 = vmul.f32 %v742, 1.442695
        %v746 = vpow.pop %v745
        %v747 = vsel %vm566, %v744, 0.0
        %748 = vadd.xlane.f32.xlu0 %v747
        %v749 = vpop.xlane.xlu0 %748
        %v750 = vsel %vm566, %v746, 0.0
        %751 = vadd.xlane.f32.xlu0 %v750
        %v752 = vpop.xlane.xlu0 %751
        %v753 = vrcp.pop %v749
        %v754 = vmul.f32 %v744, %v753
        %v755 = vrcp.pop %v752
        %v756 = vmul.f32 %v746, %v755
        %v758 = vsel %vm566, %v754, 0
        %760 = vmatprep.subr.mxu0 0.0
        %761 = vmatpush1.msra.mxu0 %v564
        %762 = vmatprep.subr.mxu0 0.0
        %763 = vmatpush1.msra.mxu0 0.0
        %764 = vmatprep.subr.mxu0 0.0
        %765 = vmatpush1.msra.mxu0 0.0
        %766 = vmatprep.subr.mxu0 0.0
        %767 = vmatpush1.msra.mxu0 0.0
        %768 = vmatprep.subr.mxu0 0.0
        %769 = vmatpush1.msra.mxu0 0.0
        %770 = vmatprep.subr.mxu0 0.0
        %771 = vmatpush1.msra.mxu0 0.0
        %772 = vmatprep.subr.mxu0 0.0
        %773 = vmatpush1.msra.mxu0 0.0
        %774 = vmatprep.subr.mxu0 0.0
        %775 = vmatpush1.msra.mxu0 0.0
        %776 = vmatprep.subr.mxu0 0.0
        %777 = vmatpush1.msra.mxu0 0.0
        %778 = vmatprep.subr.mxu0 0.0
        %779 = vmatpush1.msra.mxu0 0.0
        %780 = vmatprep.subr.mxu0 0.0
        %781 = vmatpush1.msra.mxu0 0.0
        %782 = vmatprep.subr.mxu0 0.0
        %783 = vmatpush1.msra.mxu0 0.0
        %784 = vmatprep.subr.mxu0 0.0
        %785 = vmatpush1.msra.mxu0 0.0
        %786 = vmatprep.subr.mxu0 0.0
        %787 = vmatpush1.msra.mxu0 0.0
        %788 = vmatprep.subr.mxu0 0.0
        %789 = vmatpush1.msra.mxu0 0.0
        %790 = vmatprep.subr.mxu0 0.0
        %791 = vmatpush1.msra.mxu0 0.0
        %792 = vmatprep.subr.mxu0 0.0
        %793 = vmatpush1.msra.mxu0 0.0
        %794 = vmatprep.subr.mxu0 0.0
        %795 = vmatpush1.msra.mxu0 0.0
        %796 = vmatprep.subr.mxu0 0.0
        %797 = vmatpush1.msra.mxu0 0.0
        %798 = vmatprep.subr.mxu0 0.0
        %799 = vmatpush1.msra.mxu0 0.0
        %800 = vmatprep.subr.mxu0 0.0
        %801 = vmatpush1.msra.mxu0 0.0
        %802 = vmatprep.subr.mxu0 0.0
        %803 = vmatpush1.msra.mxu0 0.0
        %804 = vmatprep.subr.mxu0 0.0
        %805 = vmatpush1.msra.mxu0 0.0
        %806 = vmatprep.subr.mxu0 0.0
        %807 = vmatpush1.msra.mxu0 0.0
        %808 = vmatprep.subr.mxu0 0.0
        %809 = vmatpush1.msra.mxu0 0.0
        %810 = vmatprep.subr.mxu0 0.0
        %811 = vmatpush1.msra.mxu0 0.0
        %812 = vmatprep.subr.mxu0 0.0
        %813 = vmatpush1.msra.mxu0 0.0
        %814 = vmatprep.subr.mxu0 0.0
        %815 = vmatpush1.msra.mxu0 0.0
        %816 = vmatprep.subr.mxu0 0.0
        %817 = vmatpush1.msra.mxu0 0.0
        %818 = vmatprep.subr.mxu0 0.0
        %819 = vmatpush1.msra.mxu0 0.0
        %820 = vmatprep.subr.mxu0 0.0
        %821 = vmatpush1.msra.mxu0 0.0
        %822 = vmatprep.subr.mxu0 0.0
        %823 = vmatpush1.msra.mxu0 0.0
        %824 = vmatprep.mubr.f32.mxu0 0.0
        %825 = vmatmul.mubr.f32.gmra.mrb[0].mxu0 %v758
        %v826 = vpop.f32.mrb[0].mxu0
        %v827 = vadd.f32 0.0, %v826
        %v828 = vpop.f32.mrb[0].mxu0
        %829 = vdwg.mxu0
        %v831 = vsel %vm566, %v756, 0
        %833 = vmatprep.subr.mxu0 0.0
        %834 = vmatpush1.msra.mxu0 %v565
        %835 = vmatprep.subr.mxu0 0.0
        %836 = vmatpush1.msra.mxu0 0.0
        %837 = vmatprep.subr.mxu0 0.0
        %838 = vmatpush1.msra.mxu0 0.0
        %839 = vmatprep.subr.mxu0 0.0
        %840 = vmatpush1.msra.mxu0 0.0
        %841 = vmatprep.subr.mxu0 0.0
        %842 = vmatpush1.msra.mxu0 0.0
        %843 = vmatprep.subr.mxu0 0.0
        %844 = vmatpush1.msra.mxu0 0.0
        %845 = vmatprep.subr.mxu0 0.0
        %846 = vmatpush1.msra.mxu0 0.0
        %847 = vmatprep.subr.mxu0 0.0
        %848 = vmatpush1.msra.mxu0 0.0
        %849 = vmatprep.subr.mxu0 0.0
        %850 = vmatpush1.msra.mxu0 0.0
        %851 = vmatprep.subr.mxu0 0.0
        %852 = vmatpush1.msra.mxu0 0.0
        %853 = vmatprep.subr.mxu0 0.0
        %854 = vmatpush1.msra.mxu0 0.0
        %855 = vmatprep.subr.mxu0 0.0
        %856 = vmatpush1.msra.mxu0 0.0
        %857 = vmatprep.subr.mxu0 0.0
        %858 = vmatpush1.msra.mxu0 0.0
        %859 = vmatprep.subr.mxu0 0.0
        %860 = vmatpush1.msra.mxu0 0.0
        %861 = vmatprep.subr.mxu0 0.0
        %862 = vmatpush1.msra.mxu0 0.0
        %863 = vmatprep.subr.mxu0 0.0
        %864 = vmatpush1.msra.mxu0 0.0
        %865 = vmatprep.subr.mxu0 0.0
        %866 = vmatpush1.msra.mxu0 0.0
        %867 = vmatprep.subr.mxu0 0.0
        %868 = vmatpush1.msra.mxu0 0.0
        %869 = vmatprep.subr.mxu0 0.0
        %870 = vmatpush1.msra.mxu0 0.0
        %871 = vmatprep.subr.mxu0 0.0
        %872 = vmatpush1.msra.mxu0 0.0
        %873 = vmatprep.subr.mxu0 0.0
        %874 = vmatpush1.msra.mxu0 0.0
        %875 = vmatprep.subr.mxu0 0.0
        %876 = vmatpush1.msra.mxu0 0.0
        %877 = vmatprep.subr.mxu0 0.0
        %878 = vmatpush1.msra.mxu0 0.0
        %879 = vmatprep.subr.mxu0 0.0
        %880 = vmatpush1.msra.mxu0 0.0
        %881 = vmatprep.subr.mxu0 0.0
        %882 = vmatpush1.msra.mxu0 0.0
        %883 = vmatprep.subr.mxu0 0.0
        %884 = vmatpush1.msra.mxu0 0.0
        %885 = vmatprep.subr.mxu0 0.0
        %886 = vmatpush1.msra.mxu0 0.0
        %887 = vmatprep.subr.mxu0 0.0
        %888 = vmatpush1.msra.mxu0 0.0
        %889 = vmatprep.subr.mxu0 0.0
        %890 = vmatpush1.msra.mxu0 0.0
        %891 = vmatprep.subr.mxu0 0.0
        %892 = vmatpush1.msra.mxu0 0.0
        %893 = vmatprep.subr.mxu0 0.0
        %894 = vmatpush1.msra.mxu0 0.0
        %895 = vmatprep.subr.mxu0 0.0
        %896 = vmatpush1.msra.mxu0 0.0
        %897 = vmatprep.mubr.f32.mxu0 0.0
        %898 = vmatmul.mubr.f32.gmra.mrb[0].mxu0 %v831
        %v899 = vpop.f32.mrb[0].mxu0
        %v900 = vadd.f32 0.0, %v899
        %v901 = vpop.f32.mrb[0].mxu0
        %902 = vdwg.mxu0
        %903 = vrot.lane.b32.xlu0 %v552, 120
        %v904 = vpop.permute.xlu0 %903
        %905 = vrot.lane.b32.xlu0 %v558, 120
        %v906 = vpop.permute.xlu0 %905
        %v907 = vsel %vm566, %v904, 0
        %v909 = vsel %vm566, %v906, 0
        %911 = vmatprep.subr.mxu0 0.0
        %912 = vmatpush1.xpose.msra.mxu0 %v909
        %913 = vmatprep.subr.mxu0 0.0
        %914 = vmatpush1.xpose.msra.mxu0 0.0
        %915 = vmatprep.subr.mxu0 0.0
        %916 = vmatpush1.xpose.msra.mxu0 0.0
        %917 = vmatprep.subr.mxu0 0.0
        %918 = vmatpush1.xpose.msra.mxu0 0.0
        %919 = vmatprep.subr.mxu0 0.0
        %920 = vmatpush1.xpose.msra.mxu0 0.0
        %921 = vmatprep.subr.mxu0 0.0
        %922 = vmatpush1.xpose.msra.mxu0 0.0
        %923 = vmatprep.subr.mxu0 0.0
        %924 = vmatpush1.xpose.msra.mxu0 0.0
        %925 = vmatprep.subr.mxu0 0.0
        %926 = vmatpush1.xpose.msra.mxu0 0.0
        %927 = vmatprep.subr.mxu0 0.0
        %928 = vmatpush1.xpose.msra.mxu0 0.0
        %929 = vmatprep.subr.mxu0 0.0
        %930 = vmatpush1.xpose.msra.mxu0 0.0
        %931 = vmatprep.subr.mxu0 0.0
        %932 = vmatpush1.xpose.msra.mxu0 0.0
        %933 = vmatprep.subr.mxu0 0.0
        %934 = vmatpush1.xpose.msra.mxu0 0.0
        %935 = vmatprep.subr.mxu0 0.0
        %936 = vmatpush1.xpose.msra.mxu0 0.0
        %937 = vmatprep.subr.mxu0 0.0
        %938 = vmatpush1.xpose.msra.mxu0 0.0
        %939 = vmatprep.subr.mxu0 0.0
        %940 = vmatpush1.xpose.msra.mxu0 0.0
        %941 = vmatprep.subr.mxu0 0.0
        %942 = vmatpush1.xpose.msra.mxu0 0.0
        %943 = vmatprep.subr.mxu0 0.0
        %944 = vmatpush1.xpose.msra.mxu0 0.0
        %945 = vmatprep.subr.mxu0 0.0
        %946 = vmatpush1.xpose.msra.mxu0 0.0
        %947 = vmatprep.subr.mxu0 0.0
        %948 = vmatpush1.xpose.msra.mxu0 0.0
        %949 = vmatprep.subr.mxu0 0.0
        %950 = vmatpush1.xpose.msra.mxu0 0.0
        %951 = vmatprep.subr.mxu0 0.0
        %952 = vmatpush1.xpose.msra.mxu0 0.0
        %953 = vmatprep.subr.mxu0 0.0
        %954 = vmatpush1.xpose.msra.mxu0 0.0
        %955 = vmatprep.subr.mxu0 0.0
        %956 = vmatpush1.xpose.msra.mxu0 0.0
        %957 = vmatprep.subr.mxu0 0.0
        %958 = vmatpush1.xpose.msra.mxu0 0.0
        %959 = vmatprep.subr.mxu0 0.0
        %960 = vmatpush1.xpose.msra.mxu0 0.0
        %961 = vmatprep.subr.mxu0 0.0
        %962 = vmatpush1.xpose.msra.mxu0 0.0
        %963 = vmatprep.subr.mxu0 0.0
        %964 = vmatpush1.xpose.msra.mxu0 0.0
        %965 = vmatprep.subr.mxu0 0.0
        %966 = vmatpush1.xpose.msra.mxu0 0.0
        %967 = vmatprep.subr.mxu0 0.0
        %968 = vmatpush1.xpose.msra.mxu0 0.0
        %969 = vmatprep.subr.mxu0 0.0
        %970 = vmatpush1.xpose.msra.mxu0 0.0
        %971 = vmatprep.subr.mxu0 0.0
        %972 = vmatpush1.xpose.msra.mxu0 0.0
        %973 = vmatprep.subr.mxu0 0.0
        %974 = vmatpush1.xpose.msra.mxu0 0.0
        %975 = vmatprep.mubr.f32.mxu0 0.0
        %976 = vmatmul.mubr.f32.gmra.mrb[0].mxu0 %v907
        %v977 = vpop.f32.mrb[0].mxu0
        %v978 = vadd.f32 0.0, %v977
        %v979 = vpop.f32.mrb[0].mxu0
        %980 = vdwg.mxu0
        %981 = vrot.lane.b32.xlu0 %v553, 120
        %v982 = vpop.permute.xlu0 %981
        %983 = vrot.lane.b32.xlu0 %v559, 120
        %v984 = vpop.permute.xlu0 %983
        %v985 = vsel %vm566, %v982, 0
        %v987 = vsel %vm566, %v984, 0
        %989 = vmatprep.subr.mxu0 0.0
        %990 = vmatpush1.xpose.msra.mxu0 %v987
        %991 = vmatprep.subr.mxu0 0.0
        %992 = vmatpush1.xpose.msra.mxu0 0.0
        %993 = vmatprep.subr.mxu0 0.0
        %994 = vmatpush1.xpose.msra.mxu0 0.0
        %995 = vmatprep.subr.mxu0 0.0
        %996 = vmatpush1.xpose.msra.mxu0 0.0
        %997 = vmatprep.subr.mxu0 0.0
        %998 = vmatpush1.xpose.msra.mxu0 0.0
        %999 = vmatprep.subr.mxu0 0.0
        %1000 = vmatpush1.xpose.msra.mxu0 0.0
        %1001 = vmatprep.subr.mxu0 0.0
        %1002 = vmatpush1.xpose.msra.mxu0 0.0
        %1003 = vmatprep.subr.mxu0 0.0
        %1004 = vmatpush1.xpose.msra.mxu0 0.0
        %1005 = vmatprep.subr.mxu0 0.0
        %1006 = vmatpush1.xpose.msra.mxu0 0.0
        %1007 = vmatprep.subr.mxu0 0.0
        %1008 = vmatpush1.xpose.msra.mxu0 0.0
        %1009 = vmatprep.subr.mxu0 0.0
        %1010 = vmatpush1.xpose.msra.mxu0 0.0
        %1011 = vmatprep.subr.mxu0 0.0
        %1012 = vmatpush1.xpose.msra.mxu0 0.0
        %1013 = vmatprep.subr.mxu0 0.0
        %1014 = vmatpush1.xpose.msra.mxu0 0.0
        %1015 = vmatprep.subr.mxu0 0.0
        %1016 = vmatpush1.xpose.msra.mxu0 0.0
        %1017 = vmatprep.subr.mxu0 0.0
        %1018 = vmatpush1.xpose.msra.mxu0 0.0
        %1019 = vmatprep.subr.mxu0 0.0
        %1020 = vmatpush1.xpose.msra.mxu0 0.0
        %1021 = vmatprep.subr.mxu0 0.0
        %1022 = vmatpush1.xpose.msra.mxu0 0.0
        %1023 = vmatprep.subr.mxu0 0.0
        %1024 = vmatpush1.xpose.msra.mxu0 0.0
        %1025 = vmatprep.subr.mxu0 0.0
        %1026 = vmatpush1.xpose.msra.mxu0 0.0
        %1027 = vmatprep.subr.mxu0 0.0
        %1028 = vmatpush1.xpose.msra.mxu0 0.0
        %1029 = vmatprep.subr.mxu0 0.0
        %1030 = vmatpush1.xpose.msra.mxu0 0.0
        %1031 = vmatprep.subr.mxu0 0.0
        %1032 = vmatpush1.xpose.msra.mxu0 0.0
        %1033 = vmatprep.subr.mxu0 0.0
        %1034 = vmatpush1.xpose.msra.mxu0 0.0
        %1035 = vmatprep.subr.mxu0 0.0
        %1036 = vmatpush1.xpose.msra.mxu0 0.0
        %1037 = vmatprep.subr.mxu0 0.0
        %1038 = vmatpush1.xpose.msra.mxu0 0.0
        %1039 = vmatprep.subr.mxu0 0.0
        %1040 = vmatpush1.xpose.msra.mxu0 0.0
        %1041 = vmatprep.subr.mxu0 0.0
        %1042 = vmatpush1.xpose.msra.mxu0 0.0
        %1043 = vmatprep.subr.mxu0 0.0
        %1044 = vmatpush1.xpose.msra.mxu0 0.0
        %1045 = vmatprep.subr.mxu0 0.0
        %1046 = vmatpush1.xpose.msra.mxu0 0.0
        %1047 = vmatprep.subr.mxu0 0.0
        %1048 = vmatpush1.xpose.msra.mxu0 0.0
        %1049 = vmatprep.subr.mxu0 0.0
        %1050 = vmatpush1.xpose.msra.mxu0 0.0
        %1051 = vmatprep.subr.mxu0 0.0
        %1052 = vmatpush1.xpose.msra.mxu0 0.0
        %1053 = vmatprep.mubr.f32.mxu0 0.0
        %1054 = vmatmul.mubr.f32.gmra.mrb[0].mxu0 %v985
        %v1055 = vpop.f32.mrb[0].mxu0
        %v1056 = vadd.f32 0.0, %v1055
        %v1057 = vpop.f32.mrb[0].mxu0
        %1058 = vdwg.mxu0
        %v1059 = vmul.f32 %v978, 0.35355338
        %v1060 = vmul.f32 %v1056, 0.35355338
        %v1061 = vadd.f32 %v1059, %v726
        %v1062 = vadd.f32 %v1060, %v730
        %v1063 = vsel %vm566, %v1061, -inf
        %1064 = vmax.xlane.f32.xlu0 %v1063
        %v1065 = vpop.xlane.xlu0 %1064
        %v1066 = vsel %vm566, %v1062, -inf
        %1067 = vmax.xlane.f32.xlu0 %v1066
        %v1068 = vpop.xlane.xlu0 %1067
        %v1069 = vsub.f32 %v1061, %v1065
        %v1070 = vsub.f32 %v1062, %v1068
        %v1071 = vmul.f32 %v1069, 1.442695
        %v1072 = vpow.pop %v1071
        %v1073 = vmul.f32 %v1070, 1.442695
        %v1074 = vpow.pop %v1073
        %v1075 = vsel %vm566, %v1072, 0.0
        %1076 = vadd.xlane.f32.xlu0 %v1075
        %v1077 = vpop.xlane.xlu0 %1076
        %v1078 = vsel %vm566, %v1074, 0.0
        %1079 = vadd.xlane.f32.xlu0 %v1078
        %v1080 = vpop.xlane.xlu0 %1079
        %v1081 = vrcp.pop %v1077
        %v1082 = vmul.f32 %v1072, %v1081
        %v1083 = vrcp.pop %v1080
        %v1084 = vmul.f32 %v1074, %v1083
        %1086 = vrot.lane.b32.xlu0 %v564, 120
        %v1087 = vpop.permute.xlu0 %1086
        %v1090 = vsel %vm566, %v1082, 0
        %1092 = vmatprep.subr.mxu0 0.0
        %1093 = vmatpush1.msra.mxu0 %v1087
        %1094 = vmatprep.subr.mxu0 0.0
        %1095 = vmatpush1.msra.mxu0 0.0
        %1096 = vmatprep.subr.mxu0 0.0
        %1097 = vmatpush1.msra.mxu0 0.0
        %1098 = vmatprep.subr.mxu0 0.0
        %1099 = vmatpush1.msra.mxu0 0.0
        %1100 = vmatprep.subr.mxu0 0.0
        %1101 = vmatpush1.msra.mxu0 0.0
        %1102 = vmatprep.subr.mxu0 0.0
        %1103 = vmatpush1.msra.mxu0 0.0
        %1104 = vmatprep.subr.mxu0 0.0
        %1105 = vmatpush1.msra.mxu0 0.0
        %1106 = vmatprep.subr.mxu0 0.0
        %1107 = vmatpush1.msra.mxu0 0.0
        %1108 = vmatprep.subr.mxu0 0.0
        %1109 = vmatpush1.msra.mxu0 0.0
        %1110 = vmatprep.subr.mxu0 0.0
        %1111 = vmatpush1.msra.mxu0 0.0
        %1112 = vmatprep.subr.mxu0 0.0
        %1113 = vmatpush1.msra.mxu0 0.0
        %1114 = vmatprep.subr.mxu0 0.0
        %1115 = vmatpush1.msra.mxu0 0.0
        %1116 = vmatprep.subr.mxu0 0.0
        %1117 = vmatpush1.msra.mxu0 0.0
        %1118 = vmatprep.subr.mxu0 0.0
        %1119 = vmatpush1.msra.mxu0 0.0
        %1120 = vmatprep.subr.mxu0 0.0
        %1121 = vmatpush1.msra.mxu0 0.0
        %1122 = vmatprep.subr.mxu0 0.0
        %1123 = vmatpush1.msra.mxu0 0.0
        %1124 = vmatprep.subr.mxu0 0.0
        %1125 = vmatpush1.msra.mxu0 0.0
        %1126 = vmatprep.subr.mxu0 0.0
        %1127 = vmatpush1.msra.mxu0 0.0
        %1128 = vmatprep.subr.mxu0 0.0
        %1129 = vmatpush1.msra.mxu0 0.0
        %1130 = vmatprep.subr.mxu0 0.0
        %1131 = vmatpush1.msra.mxu0 0.0
        %1132 = vmatprep.subr.mxu0 0.0
        %1133 = vmatpush1.msra.mxu0 0.0
        %1134 = vmatprep.subr.mxu0 0.0
        %1135 = vmatpush1.msra.mxu0 0.0
        %1136 = vmatprep.subr.mxu0 0.0
        %1137 = vmatpush1.msra.mxu0 0.0
        %1138 = vmatprep.subr.mxu0 0.0
        %1139 = vmatpush1.msra.mxu0 0.0
        %1140 = vmatprep.subr.mxu0 0.0
        %1141 = vmatpush1.msra.mxu0 0.0
        %1142 = vmatprep.subr.mxu0 0.0
        %1143 = vmatpush1.msra.mxu0 0.0
        %1144 = vmatprep.subr.mxu0 0.0
        %1145 = vmatpush1.msra.mxu0 0.0
        %1146 = vmatprep.subr.mxu0 0.0
        %1147 = vmatpush1.msra.mxu0 0.0
        %1148 = vmatprep.subr.mxu0 0.0
        %1149 = vmatpush1.msra.mxu0 0.0
        %1150 = vmatprep.subr.mxu0 0.0
        %1151 = vmatpush1.msra.mxu0 0.0
        %1152 = vmatprep.subr.mxu0 0.0
        %1153 = vmatpush1.msra.mxu0 0.0
        %1154 = vmatprep.subr.mxu0 0.0
        %1155 = vmatpush1.msra.mxu0 0.0
        %1156 = vmatprep.mubr.f32.mxu0 0.0
        %1157 = vmatmul.mubr.f32.gmra.mrb[0].mxu0 %v1090
        %v1158 = vpop.f32.mrb[0].mxu0
        %v1159 = vadd.f32 0.0, %v1158
        %v1160 = vpop.f32.mrb[0].mxu0
        %1161 = vdwg.mxu0
        %1163 = vrot.lane.b32.xlu0 %v565, 120
        %v1164 = vpop.permute.xlu0 %1163
        %v1167 = vsel %vm566, %v1084, 0
        %1169 = vmatprep.subr.mxu0 0.0
        %1170 = vmatpush1.msra.mxu0 %v1164
        %1171 = vmatprep.subr.mxu0 0.0
        %1172 = vmatpush1.msra.mxu0 0.0
        %1173 = vmatprep.subr.mxu0 0.0
        %1174 = vmatpush1.msra.mxu0 0.0
        %1175 = vmatprep.subr.mxu0 0.0
        %1176 = vmatpush1.msra.mxu0 0.0
        %1177 = vmatprep.subr.mxu0 0.0
        %1178 = vmatpush1.msra.mxu0 0.0
        %1179 = vmatprep.subr.mxu0 0.0
        %1180 = vmatpush1.msra.mxu0 0.0
        %1181 = vmatprep.subr.mxu0 0.0
        %1182 = vmatpush1.msra.mxu0 0.0
        %1183 = vmatprep.subr.mxu0 0.0
        %1184 = vmatpush1.msra.mxu0 0.0
        %1185 = vmatprep.subr.mxu0 0.0
        %1186 = vmatpush1.msra.mxu0 0.0
        %1187 = vmatprep.subr.mxu0 0.0
        %1188 = vmatpush1.msra.mxu0 0.0
        %1189 = vmatprep.subr.mxu0 0.0
        %1190 = vmatpush1.msra.mxu0 0.0
        %1191 = vmatprep.subr.mxu0 0.0
        %1192 = vmatpush1.msra.mxu0 0.0
        %1193 = vmatprep.subr.mxu0 0.0
        %1194 = vmatpush1.msra.mxu0 0.0
        %1195 = vmatprep.subr.mxu0 0.0
        %1196 = vmatpush1.msra.mxu0 0.0
        %1197 = vmatprep.subr.mxu0 0.0
        %1198 = vmatpush1.msra.mxu0 0.0
        %1199 = vmatprep.subr.mxu0 0.0
        %1200 = vmatpush1.msra.mxu0 0.0
        %1201 = vmatprep.subr.mxu0 0.0
        %1202 = vmatpush1.msra.mxu0 0.0
        %1203 = vmatprep.subr.mxu0 0.0
        %1204 = vmatpush1.msra.mxu0 0.0
        %1205 = vmatprep.subr.mxu0 0.0
        %1206 = vmatpush1.msra.mxu0 0.0
        %1207 = vmatprep.subr.mxu0 0.0
        %1208 = vmatpush1.msra.mxu0 0.0
        %1209 = vmatprep.subr.mxu0 0.0
        %1210 = vmatpush1.msra.mxu0 0.0
        %1211 = vmatprep.subr.mxu0 0.0
        %1212 = vmatpush1.msra.mxu0 0.0
        %1213 = vmatprep.subr.mxu0 0.0
        %1214 = vmatpush1.msra.mxu0 0.0
        %1215 = vmatprep.subr.mxu0 0.0
        %1216 = vmatpush1.msra.mxu0 0.0
        %1217 = vmatprep.subr.mxu0 0.0
        %1218 = vmatpush1.msra.mxu0 0.0
        %1219 = vmatprep.subr.mxu0 0.0
        %1220 = vmatpush1.msra.mxu0 0.0
        %1221 = vmatprep.subr.mxu0 0.0
        %1222 = vmatpush1.msra.mxu0 0.0
        %1223 = vmatprep.subr.mxu0 0.0
        %1224 = vmatpush1.msra.mxu0 0.0
        %1225 = vmatprep.subr.mxu0 0.0
        %1226 = vmatpush1.msra.mxu0 0.0
        %1227 = vmatprep.subr.mxu0 0.0
        %1228 = vmatpush1.msra.mxu0 0.0
        %1229 = vmatprep.subr.mxu0 0.0
        %1230 = vmatpush1.msra.mxu0 0.0
        %1231 = vmatprep.subr.mxu0 0.0
        %1232 = vmatpush1.msra.mxu0 0.0
        %1233 = vmatprep.mubr.f32.mxu0 0.0
        %1234 = vmatmul.mubr.f32.gmra.mrb[0].mxu0 %v1167
        %v1235 = vpop.f32.mrb[0].mxu0
        %v1236 = vadd.f32 0.0, %v1235
        %v1237 = vpop.f32.mrb[0].mxu0
        %1238 = vdwg.mxu0
        %1239 = vrot.lane.b32.xlu0 %v552, 112
        %v1240 = vpop.permute.xlu0 %1239
        %1241 = vrot.lane.b32.xlu0 %v558, 112
        %v1242 = vpop.permute.xlu0 %1241
        %v1243 = vsel %vm566, %v1240, 0
        %v1245 = vsel %vm566, %v1242, 0
        %1247 = vmatprep.subr.mxu0 0.0
        %1248 = vmatpush1.xpose.msra.mxu0 %v1245
        %1249 = vmatprep.subr.mxu0 0.0
        %1250 = vmatpush1.xpose.msra.mxu0 0.0
        %1251 = vmatprep.subr.mxu0 0.0
        %1252 = vmatpush1.xpose.msra.mxu0 0.0
        %1253 = vmatprep.subr.mxu0 0.0
        %1254 = vmatpush1.xpose.msra.mxu0 0.0
        %1255 = vmatprep.subr.mxu0 0.0
        %1256 = vmatpush1.xpose.msra.mxu0 0.0
        %1257 = vmatprep.subr.mxu0 0.0
        %1258 = vmatpush1.xpose.msra.mxu0 0.0
        %1259 = vmatprep.subr.mxu0 0.0
        %1260 = vmatpush1.xpose.msra.mxu0 0.0
        %1261 = vmatprep.subr.mxu0 0.0
        %1262 = vmatpush1.xpose.msra.mxu0 0.0
        %1263 = vmatprep.subr.mxu0 0.0
        %1264 = vmatpush1.xpose.msra.mxu0 0.0
        %1265 = vmatprep.subr.mxu0 0.0
        %1266 = vmatpush1.xpose.msra.mxu0 0.0
        %1267 = vmatprep.subr.mxu0 0.0
        %1268 = vmatpush1.xpose.msra.mxu0 0.0
        %1269 = vmatprep.subr.mxu0 0.0
        %1270 = vmatpush1.xpose.msra.mxu0 0.0
        %1271 = vmatprep.subr.mxu0 0.0
        %1272 = vmatpush1.xpose.msra.mxu0 0.0
        %1273 = vmatprep.subr.mxu0 0.0
        %1274 = vmatpush1.xpose.msra.mxu0 0.0
        %1275 = vmatprep.subr.mxu0 0.0
        %1276 = vmatpush1.xpose.msra.mxu0 0.0
        %1277 = vmatprep.subr.mxu0 0.0
        %1278 = vmatpush1.xpose.msra.mxu0 0.0
        %1279 = vmatprep.subr.mxu0 0.0
        %1280 = vmatpush1.xpose.msra.mxu0 0.0
        %1281 = vmatprep.subr.mxu0 0.0
        %1282 = vmatpush1.xpose.msra.mxu0 0.0
        %1283 = vmatprep.subr.mxu0 0.0
        %1284 = vmatpush1.xpose.msra.mxu0 0.0
        %1285 = vmatprep.subr.mxu0 0.0
        %1286 = vmatpush1.xpose.msra.mxu0 0.0
        %1287 = vmatprep.subr.mxu0 0.0
        %1288 = vmatpush1.xpose.msra.mxu0 0.0
        %1289 = vmatprep.subr.mxu0 0.0
        %1290 = vmatpush1.xpose.msra.mxu0 0.0
        %1291 = vmatprep.subr.mxu0 0.0
        %1292 = vmatpush1.xpose.msra.mxu0 0.0
        %1293 = vmatprep.subr.mxu0 0.0
        %1294 = vmatpush1.xpose.msra.mxu0 0.0
        %1295 = vmatprep.subr.mxu0 0.0
        %1296 = vmatpush1.xpose.msra.mxu0 0.0
        %1297 = vmatprep.subr.mxu0 0.0
        %1298 = vmatpush1.xpose.msra.mxu0 0.0
        %1299 = vmatprep.subr.mxu0 0.0
        %1300 = vmatpush1.xpose.msra.mxu0 0.0
        %1301 = vmatprep.subr.mxu0 0.0
        %1302 = vmatpush1.xpose.msra.mxu0 0.0
        %1303 = vmatprep.subr.mxu0 0.0
        %1304 = vmatpush1.xpose.msra.mxu0 0.0
        %1305 = vmatprep.subr.mxu0 0.0
        %1306 = vmatpush1.xpose.msra.mxu0 0.0
        %1307 = vmatprep.subr.mxu0 0.0
        %1308 = vmatpush1.xpose.msra.mxu0 0.0
        %1309 = vmatprep.subr.mxu0 0.0
        %1310 = vmatpush1.xpose.msra.mxu0 0.0
        %1311 = vmatprep.mubr.f32.mxu0 0.0
        %1312 = vmatmul.mubr.f32.gmra.mrb[0].mxu0 %v1243
        %v1313 = vpop.f32.mrb[0].mxu0
        %v1314 = vadd.f32 0.0, %v1313
        %v1315 = vpop.f32.mrb[0].mxu0
        %1316 = vdwg.mxu0
        %1317 = vrot.lane.b32.xlu0 %v553, 112
        %v1318 = vpop.permute.xlu0 %1317
        %1319 = vrot.lane.b32.xlu0 %v559, 112
        %v1320 = vpop.permute.xlu0 %1319
        %v1321 = vsel %vm566, %v1318, 0
        %v1323 = vsel %vm566, %v1320, 0
        %1325 = vmatprep.subr.mxu0 0.0
        %1326 = vmatpush1.xpose.msra.mxu0 %v1323
        %1327 = vmatprep.subr.mxu0 0.0
        %1328 = vmatpush1.xpose.msra.mxu0 0.0
        %1329 = vmatprep.subr.mxu0 0.0
        %1330 = vmatpush1.xpose.msra.mxu0 0.0
        %1331 = vmatprep.subr.mxu0 0.0
        %1332 = vmatpush1.xpose.msra.mxu0 0.0
        %1333 = vmatprep.subr.mxu0 0.0
        %1334 = vmatpush1.xpose.msra.mxu0 0.0
        %1335 = vmatprep.subr.mxu0 0.0
        %1336 = vmatpush1.xpose.msra.mxu0 0.0
        %1337 = vmatprep.subr.mxu0 0.0
        %1338 = vmatpush1.xpose.msra.mxu0 0.0
        %1339 = vmatprep.subr.mxu0 0.0
        %1340 = vmatpush1.xpose.msra.mxu0 0.0
        %1341 = vmatprep.subr.mxu0 0.0
        %1342 = vmatpush1.xpose.msra.mxu0 0.0
        %1343 = vmatprep.subr.mxu0 0.0
        %1344 = vmatpush1.xpose.msra.mxu0 0.0
        %1345 = vmatprep.subr.mxu0 0.0
        %1346 = vmatpush1.xpose.msra.mxu0 0.0
        %1347 = vmatprep.subr.mxu0 0.0
        %1348 = vmatpush1.xpose.msra.mxu0 0.0
        %1349 = vmatprep.subr.mxu0 0.0
        %1350 = vmatpush1.xpose.msra.mxu0 0.0
        %1351 = vmatprep.subr.mxu0 0.0
        %1352 = vmatpush1.xpose.msra.mxu0 0.0
        %1353 = vmatprep.subr.mxu0 0.0
        %1354 = vmatpush1.xpose.msra.mxu0 0.0
        %1355 = vmatprep.subr.mxu0 0.0
        %1356 = vmatpush1.xpose.msra.mxu0 0.0
        %1357 = vmatprep.subr.mxu0 0.0
        %1358 = vmatpush1.xpose.msra.mxu0 0.0
        %1359 = vmatprep.subr.mxu0 0.0
        %1360 = vmatpush1.xpose.msra.mxu0 0.0
        %1361 = vmatprep.subr.mxu0 0.0
        %1362 = vmatpush1.xpose.msra.mxu0 0.0
        %1363 = vmatprep.subr.mxu0 0.0
        %1364 = vmatpush1.xpose.msra.mxu0 0.0
        %1365 = vmatprep.subr.mxu0 0.0
        %1366 = vmatpush1.xpose.msra.mxu0 0.0
        %1367 = vmatprep.subr.mxu0 0.0
        %1368 = vmatpush1.xpose.msra.mxu0 0.0
        %1369 = vmatprep.subr.mxu0 0.0
        %1370 = vmatpush1.xpose.msra.mxu0 0.0
        %1371 = vmatprep.subr.mxu0 0.0
        %1372 = vmatpush1.xpose.msra.mxu0 0.0
        %1373 = vmatprep.subr.mxu0 0.0
        %1374 = vmatpush1.xpose.msra.mxu0 0.0
        %1375 = vmatprep.subr.mxu0 0.0
        %1376 = vmatpush1.xpose.msra.mxu0 0.0
        %1377 = vmatprep.subr.mxu0 0.0
        %1378 = vmatpush1.xpose.msra.mxu0 0.0
        %1379 = vmatprep.subr.mxu0 0.0
        %1380 = vmatpush1.xpose.msra.mxu0 0.0
        %1381 = vmatprep.subr.mxu0 0.0
        %1382 = vmatpush1.xpose.msra.mxu0 0.0
        %1383 = vmatprep.subr.mxu0 0.0
        %1384 = vmatpush1.xpose.msra.mxu0 0.0
        %1385 = vmatprep.subr.mxu0 0.0
        %1386 = vmatpush1.xpose.msra.mxu0 0.0
        %1387 = vmatprep.subr.mxu0 0.0
        %1388 = vmatpush1.xpose.msra.mxu0 0.0
        %1389 = vmatprep.mubr.f32.mxu0 0.0
        %1390 = vmatmul.mubr.f32.gmra.mrb[0].mxu0 %v1321
        %v1391 = vpop.f32.mrb[0].mxu0
        %v1392 = vadd.f32 0.0, %v1391
        %v1393 = vpop.f32.mrb[0].mxu0
        %1394 = vdwg.mxu0
        %v1395 = vmul.f32 %v1314, 0.35355338
        %v1396 = vmul.f32 %v1392, 0.35355338
        %v1397 = vadd.f32 %v1395, %v726
        %v1398 = vadd.f32 %v1396, %v730
        %v1399 = vsel %vm566, %v1397, -inf
        %1400 = vmax.xlane.f32.xlu0 %v1399
        %v1401 = vpop.xlane.xlu0 %1400
        %v1402 = vsel %vm566, %v1398, -inf
        %1403 = vmax.xlane.f32.xlu0 %v1402
        %v1404 = vpop.xlane.xlu0 %1403
        %v1405 = vsub.f32 %v1397, %v1401
        %v1406 = vsub.f32 %v1398, %v1404
        %v1407 = vmul.f32 %v1405, 1.442695
        %v1408 = vpow.pop %v1407
        %v1409 = vmul.f32 %v1406, 1.442695
        %v1410 = vpow.pop %v1409
        %v1411 = vsel %vm566, %v1408, 0.0
        %1412 = vadd.xlane.f32.xlu0 %v1411
        %v1413 = vpop.xlane.xlu0 %1412
        %v1414 = vsel %vm566, %v1410, 0.0
        %1415 = vadd.xlane.f32.xlu0 %v1414
        %v1416 = vpop.xlane.xlu0 %1415
        %v1417 = vrcp.pop %v1413
        %v1418 = vmul.f32 %v1408, %v1417
        %v1419 = vrcp.pop %v1416
        %v1420 = vmul.f32 %v1410, %v1419
        %1421 = vrot.lane.b32.xlu0 %v564, 112
        %v1422 = vpop.permute.xlu0 %1421
        %v1425 = vsel %vm566, %v1418, 0
        %1427 = vmatprep.subr.mxu0 0.0
        %1428 = vmatpush1.msra.mxu0 %v1422
        %1429 = vmatprep.subr.mxu0 0.0
        %1430 = vmatpush1.msra.mxu0 0.0
        %1431 = vmatprep.subr.mxu0 0.0
        %1432 = vmatpush1.msra.mxu0 0.0
        %1433 = vmatprep.subr.mxu0 0.0
        %1434 = vmatpush1.msra.mxu0 0.0
        %1435 = vmatprep.subr.mxu0 0.0
        %1436 = vmatpush1.msra.mxu0 0.0
        %1437 = vmatprep.subr.mxu0 0.0
        %1438 = vmatpush1.msra.mxu0 0.0
        %1439 = vmatprep.subr.mxu0 0.0
        %1440 = vmatpush1.msra.mxu0 0.0
        %1441 = vmatprep.subr.mxu0 0.0
        %1442 = vmatpush1.msra.mxu0 0.0
        %1443 = vmatprep.subr.mxu0 0.0
        %1444 = vmatpush1.msra.mxu0 0.0
        %1445 = vmatprep.subr.mxu0 0.0
        %1446 = vmatpush1.msra.mxu0 0.0
        %1447 = vmatprep.subr.mxu0 0.0
        %1448 = vmatpush1.msra.mxu0 0.0
        %1449 = vmatprep.subr.mxu0 0.0
        %1450 = vmatpush1.msra.mxu0 0.0
        %1451 = vmatprep.subr.mxu0 0.0
        %1452 = vmatpush1.msra.mxu0 0.0
        %1453 = vmatprep.subr.mxu0 0.0
        %1454 = vmatpush1.msra.mxu0 0.0
        %1455 = vmatprep.subr.mxu0 0.0
        %1456 = vmatpush1.msra.mxu0 0.0
        %1457 = vmatprep.subr.mxu0 0.0
        %1458 = vmatpush1.msra.mxu0 0.0
        %1459 = vmatprep.subr.mxu0 0.0
        %1460 = vmatpush1.msra.mxu0 0.0
        %1461 = vmatprep.subr.mxu0 0.0
        %1462 = vmatpush1.msra.mxu0 0.0
        %1463 = vmatprep.subr.mxu0 0.0
        %1464 = vmatpush1.msra.mxu0 0.0
        %1465 = vmatprep.subr.mxu0 0.0
        %1466 = vmatpush1.msra.mxu0 0.0
        %1467 = vmatprep.subr.mxu0 0.0
        %1468 = vmatpush1.msra.mxu0 0.0
        %1469 = vmatprep.subr.mxu0 0.0
        %1470 = vmatpush1.msra.mxu0 0.0
        %1471 = vmatprep.subr.mxu0 0.0
        %1472 = vmatpush1.msra.mxu0 0.0
        %1473 = vmatprep.subr.mxu0 0.0
        %1474 = vmatpush1.msra.mxu0 0.0
        %1475 = vmatprep.subr.mxu0 0.0
        %1476 = vmatpush1.msra.mxu0 0.0
        %1477 = vmatprep.subr.mxu0 0.0
        %1478 = vmatpush1.msra.mxu0 0.0
        %1479 = vmatprep.subr.mxu0 0.0
        %1480 = vmatpush1.msra.mxu0 0.0
        %1481 = vmatprep.subr.mxu0 0.0
        %1482 = vmatpush1.msra.mxu0 0.0
        %1483 = vmatprep.subr.mxu0 0.0
        %1484 = vmatpush1.msra.mxu0 0.0
        %1485 = vmatprep.subr.mxu0 0.0
        %1486 = vmatpush1.msra.mxu0 0.0
        %1487 = vmatprep.subr.mxu0 0.0
        %1488 = vmatpush1.msra.mxu0 0.0
        %1489 = vmatprep.subr.mxu0 0.0
        %1490 = vmatpush1.msra.mxu0 0.0
        %1491 = vmatprep.mubr.f32.mxu0 0.0
        %1492 = vmatmul.mubr.f32.gmra.mrb[0].mxu0 %v1425
        %v1493 = vpop.f32.mrb[0].mxu0
        %v1494 = vadd.f32 0.0, %v1493
        %v1495 = vpop.f32.mrb[0].mxu0
        %1496 = vdwg.mxu0
        %1497 = vrot.lane.b32.xlu0 %v565, 112
        %v1498 = vpop.permute.xlu0 %1497
        %v1501 = vsel %vm566, %v1420, 0
        %1503 = vmatprep.subr.mxu0 0.0
        %1504 = vmatpush1.msra.mxu0 %v1498
        %1505 = vmatprep.subr.mxu0 0.0
        %1506 = vmatpush1.msra.mxu0 0.0
        %1507 = vmatprep.subr.mxu0 0.0
        %1508 = vmatpush1.msra.mxu0 0.0
        %1509 = vmatprep.subr.mxu0 0.0
        %1510 = vmatpush1.msra.mxu0 0.0
        %1511 = vmatprep.subr.mxu0 0.0
        %1512 = vmatpush1.msra.mxu0 0.0
        %1513 = vmatprep.subr.mxu0 0.0
        %1514 = vmatpush1.msra.mxu0 0.0
        %1515 = vmatprep.subr.mxu0 0.0
        %1516 = vmatpush1.msra.mxu0 0.0
        %1517 = vmatprep.subr.mxu0 0.0
        %1518 = vmatpush1.msra.mxu0 0.0
        %1519 = vmatprep.subr.mxu0 0.0
        %1520 = vmatpush1.msra.mxu0 0.0
        %1521 = vmatprep.subr.mxu0 0.0
        %1522 = vmatpush1.msra.mxu0 0.0
        %1523 = vmatprep.subr.mxu0 0.0
        %1524 = vmatpush1.msra.mxu0 0.0
        %1525 = vmatprep.subr.mxu0 0.0
        %1526 = vmatpush1.msra.mxu0 0.0
        %1527 = vmatprep.subr.mxu0 0.0
        %1528 = vmatpush1.msra.mxu0 0.0
        %1529 = vmatprep.subr.mxu0 0.0
        %1530 = vmatpush1.msra.mxu0 0.0
        %1531 = vmatprep.subr.mxu0 0.0
        %1532 = vmatpush1.msra.mxu0 0.0
        %1533 = vmatprep.subr.mxu0 0.0
        %1534 = vmatpush1.msra.mxu0 0.0
        %1535 = vmatprep.subr.mxu0 0.0
        %1536 = vmatpush1.msra.mxu0 0.0
        %1537 = vmatprep.subr.mxu0 0.0
        %1538 = vmatpush1.msra.mxu0 0.0
        %1539 = vmatprep.subr.mxu0 0.0
        %1540 = vmatpush1.msra.mxu0 0.0
        %1541 = vmatprep.subr.mxu0 0.0
        %1542 = vmatpush1.msra.mxu0 0.0
        %1543 = vmatprep.subr.mxu0 0.0
        %1544 = vmatpush1.msra.mxu0 0.0
        %1545 = vmatprep.subr.mxu0 0.0
        %1546 = vmatpush1.msra.mxu0 0.0
        %1547 = vmatprep.subr.mxu0 0.0
        %1548 = vmatpush1.msra.mxu0 0.0
        %1549 = vmatprep.subr.mxu0 0.0
        %1550 = vmatpush1.msra.mxu0 0.0
        %1551 = vmatprep.subr.mxu0 0.0
        %1552 = vmatpush1.msra.mxu0 0.0
        %1553 = vmatprep.subr.mxu0 0.0
        %1554 = vmatpush1.msra.mxu0 0.0
        %1555 = vmatprep.subr.mxu0 0.0
        %1556 = vmatpush1.msra.mxu0 0.0
        %1557 = vmatprep.subr.mxu0 0.0
        %1558 = vmatpush1.msra.mxu0 0.0
        %1559 = vmatprep.subr.mxu0 0.0
        %1560 = vmatpush1.msra.mxu0 0.0
        %1561 = vmatprep.subr.mxu0 0.0
        %1562 = vmatpush1.msra.mxu0 0.0
        %1563 = vmatprep.subr.mxu0 0.0
        %1564 = vmatpush1.msra.mxu0 0.0
        %1565 = vmatprep.subr.mxu0 0.0
        %1566 = vmatpush1.msra.mxu0 0.0
        %1567 = vmatprep.mubr.f32.mxu0 0.0
        %1568 = vmatmul.mubr.f32.gmra.mrb[0].mxu0 %v1501
        %v1569 = vpop.f32.mrb[0].mxu0
        %v1570 = vadd.f32 0.0, %v1569
        %v1571 = vpop.f32.mrb[0].mxu0
        %1572 = vdwg.mxu0
        %1573 = vrot.lane.b32.xlu0 %v552, 104
        %v1574 = vpop.permute.xlu0 %1573
        %1575 = vrot.lane.b32.xlu0 %v558, 104
        %v1576 = vpop.permute.xlu0 %1575
        %v1577 = vsel %vm566, %v1574, 0
        %v1579 = vsel %vm566, %v1576, 0
        %1581 = vmatprep.subr.mxu0 0.0
        %1582 = vmatpush1.xpose.msra.mxu0 %v1579
        %1583 = vmatprep.subr.mxu0 0.0
        %1584 = vmatpush1.xpose.msra.mxu0 0.0
        %1585 = vmatprep.subr.mxu0 0.0
        %1586 = vmatpush1.xpose.msra.mxu0 0.0
        %1587 = vmatprep.subr.mxu0 0.0
        %1588 = vmatpush1.xpose.msra.mxu0 0.0
        %1589 = vmatprep.subr.mxu0 0.0
        %1590 = vmatpush1.xpose.msra.mxu0 0.0
        %1591 = vmatprep.subr.mxu0 0.0
        %1592 = vmatpush1.xpose.msra.mxu0 0.0
        %1593 = vmatprep.subr.mxu0 0.0
        %1594 = vmatpush1.xpose.msra.mxu0 0.0
        %1595 = vmatprep.subr.mxu0 0.0
        %1596 = vmatpush1.xpose.msra.mxu0 0.0
        %1597 = vmatprep.subr.mxu0 0.0
        %1598 = vmatpush1.xpose.msra.mxu0 0.0
        %1599 = vmatprep.subr.mxu0 0.0
        %1600 = vmatpush1.xpose.msra.mxu0 0.0
        %1601 = vmatprep.subr.mxu0 0.0
        %1602 = vmatpush1.xpose.msra.mxu0 0.0
        %1603 = vmatprep.subr.mxu0 0.0
        %1604 = vmatpush1.xpose.msra.mxu0 0.0
        %1605 = vmatprep.subr.mxu0 0.0
        %1606 = vmatpush1.xpose.msra.mxu0 0.0
        %1607 = vmatprep.subr.mxu0 0.0
        %1608 = vmatpush1.xpose.msra.mxu0 0.0
        %1609 = vmatprep.subr.mxu0 0.0
        %1610 = vmatpush1.xpose.msra.mxu0 0.0
        %1611 = vmatprep.subr.mxu0 0.0
        %1612 = vmatpush1.xpose.msra.mxu0 0.0
        %1613 = vmatprep.subr.mxu0 0.0
        %1614 = vmatpush1.xpose.msra.mxu0 0.0
        %1615 = vmatprep.subr.mxu0 0.0
        %1616 = vmatpush1.xpose.msra.mxu0 0.0
        %1617 = vmatprep.subr.mxu0 0.0
        %1618 = vmatpush1.xpose.msra.mxu0 0.0
        %1619 = vmatprep.subr.mxu0 0.0
        %1620 = vmatpush1.xpose.msra.mxu0 0.0
        %1621 = vmatprep.subr.mxu0 0.0
        %1622 = vmatpush1.xpose.msra.mxu0 0.0
        %1623 = vmatprep.subr.mxu0 0.0
        %1624 = vmatpush1.xpose.msra.mxu0 0.0
        %1625 = vmatprep.subr.mxu0 0.0
        %1626 = vmatpush1.xpose.msra.mxu0 0.0
        %1627 = vmatprep.subr.mxu0 0.0
        %1628 = vmatpush1.xpose.msra.mxu0 0.0
        %1629 = vmatprep.subr.mxu0 0.0
        %1630 = vmatpush1.xpose.msra.mxu0 0.0
        %1631 = vmatprep.subr.mxu0 0.0
        %1632 = vmatpush1.xpose.msra.mxu0 0.0
        %1633 = vmatprep.subr.mxu0 0.0
        %1634 = vmatpush1.xpose.msra.mxu0 0.0
        %1635 = vmatprep.subr.mxu0 0.0
        %1636 = vmatpush1.xpose.msra.mxu0 0.0
        %1637 = vmatprep.subr.mxu0 0.0
        %1638 = vmatpush1.xpose.msra.mxu0 0.0
        %1639 = vmatprep.subr.mxu0 0.0
        %1640 = vmatpush1.xpose.msra.mxu0 0.0
        %1641 = vmatprep.subr.mxu0 0.0
        %1642 = vmatpush1.xpose.msra.mxu0 0.0
        %1643 = vmatprep.subr.mxu0 0.0
        %1644 = vmatpush1.xpose.msra.mxu0 0.0
        %1645 = vmatprep.mubr.f32.mxu0 0.0
        %1646 = vmatmul.mubr.f32.gmra.mrb[0].mxu0 %v1577
        %v1647 = vpop.f32.mrb[0].mxu0
        %v1648 = vadd.f32 0.0, %v1647
        %v1649 = vpop.f32.mrb[0].mxu0
        %1650 = vdwg.mxu0
        %1651 = vrot.lane.b32.xlu0 %v553, 104
        %v1652 = vpop.permute.xlu0 %1651
        %1653 = vrot.lane.b32.xlu0 %v559, 104
        %v1654 = vpop.permute.xlu0 %1653
        %v1655 = vsel %vm566, %v1652, 0
        %v1657 = vsel %vm566, %v1654, 0
        %1659 = vmatprep.subr.mxu0 0.0
        %1660 = vmatpush1.xpose.msra.mxu0 %v1657
        %1661 = vmatprep.subr.mxu0 0.0
        %1662 = vmatpush1.xpose.msra.mxu0 0.0
        %1663 = vmatprep.subr.mxu0 0.0
        %1664 = vmatpush1.xpose.msra.mxu0 0.0
        %1665 = vmatprep.subr.mxu0 0.0
        %1666 = vmatpush1.xpose.msra.mxu0 0.0
        %1667 = vmatprep.subr.mxu0 0.0
        %1668 = vmatpush1.xpose.msra.mxu0 0.0
        %1669 = vmatprep.subr.mxu0 0.0
        %1670 = vmatpush1.xpose.msra.mxu0 0.0
        %1671 = vmatprep.subr.mxu0 0.0
        %1672 = vmatpush1.xpose.msra.mxu0 0.0
        %1673 = vmatprep.subr.mxu0 0.0
        %1674 = vmatpush1.xpose.msra.mxu0 0.0
        %1675 = vmatprep.subr.mxu0 0.0
        %1676 = vmatpush1.xpose.msra.mxu0 0.0
        %1677 = vmatprep.subr.mxu0 0.0
        %1678 = vmatpush1.xpose.msra.mxu0 0.0
        %1679 = vmatprep.subr.mxu0 0.0
        %1680 = vmatpush1.xpose.msra.mxu0 0.0
        %1681 = vmatprep.subr.mxu0 0.0
        %1682 = vmatpush1.xpose.msra.mxu0 0.0
        %1683 = vmatprep.subr.mxu0 0.0
        %1684 = vmatpush1.xpose.msra.mxu0 0.0
        %1685 = vmatprep.subr.mxu0 0.0
        %1686 = vmatpush1.xpose.msra.mxu0 0.0
        %1687 = vmatprep.subr.mxu0 0.0
        %1688 = vmatpush1.xpose.msra.mxu0 0.0
        %1689 = vmatprep.subr.mxu0 0.0
        %1690 = vmatpush1.xpose.msra.mxu0 0.0
        %1691 = vmatprep.subr.mxu0 0.0
        %1692 = vmatpush1.xpose.msra.mxu0 0.0
        %1693 = vmatprep.subr.mxu0 0.0
        %1694 = vmatpush1.xpose.msra.mxu0 0.0
        %1695 = vmatprep.subr.mxu0 0.0
        %1696 = vmatpush1.xpose.msra.mxu0 0.0
        %1697 = vmatprep.subr.mxu0 0.0
        %1698 = vmatpush1.xpose.msra.mxu0 0.0
        %1699 = vmatprep.subr.mxu0 0.0
        %1700 = vmatpush1.xpose.msra.mxu0 0.0
        %1701 = vmatprep.subr.mxu0 0.0
        %1702 = vmatpush1.xpose.msra.mxu0 0.0
        %1703 = vmatprep.subr.mxu0 0.0
        %1704 = vmatpush1.xpose.msra.mxu0 0.0
        %1705 = vmatprep.subr.mxu0 0.0
        %1706 = vmatpush1.xpose.msra.mxu0 0.0
        %1707 = vmatprep.subr.mxu0 0.0
        %1708 = vmatpush1.xpose.msra.mxu0 0.0
        %1709 = vmatprep.subr.mxu0 0.0
        %1710 = vmatpush1.xpose.msra.mxu0 0.0
        %1711 = vmatprep.subr.mxu0 0.0
        %1712 = vmatpush1.xpose.msra.mxu0 0.0
        %1713 = vmatprep.subr.mxu0 0.0
        %1714 = vmatpush1.xpose.msra.mxu0 0.0
        %1715 = vmatprep.subr.mxu0 0.0
        %1716 = vmatpush1.xpose.msra.mxu0 0.0
        %1717 = vmatprep.subr.mxu0 0.0
        %1718 = vmatpush1.xpose.msra.mxu0 0.0
        %1719 = vmatprep.subr.mxu0 0.0
        %1720 = vmatpush1.xpose.msra.mxu0 0.0
        %1721 = vmatprep.subr.mxu0 0.0
        %1722 = vmatpush1.xpose.msra.mxu0 0.0
        %1723 = vmatprep.mubr.f32.mxu0 0.0
        %1724 = vmatmul.mubr.f32.gmra.mrb[0].mxu0 %v1655
        %v1725 = vpop.f32.mrb[0].mxu0
        %v1726 = vadd.f32 0.0, %v1725
        %v1727 = vpop.f32.mrb[0].mxu0
        %1728 = vdwg.mxu0
        %v1729 = vmul.f32 %v1648, 0.35355338
        %v1730 = vmul.f32 %v1726, 0.35355338
        %v1731 = vadd.f32 %v1729, %v726
        %v1732 = vadd.f32 %v1730, %v730
        %v1733 = vsel %vm566, %v1731, -inf
        %1734 = vmax.xlane.f32.xlu0 %v1733
        %v1735 = vpop.xlane.xlu0 %1734
        %v1736 = vsel %vm566, %v1732, -inf
        %1737 = vmax.xlane.f32.xlu0 %v1736
        %v1738 = vpop.xlane.xlu0 %1737
        %v1739 = vsub.f32 %v1731, %v1735
        %v1740 = vsub.f32 %v1732, %v1738
        %v1741 = vmul.f32 %v1739, 1.442695
        %v1742 = vpow.pop %v1741
        %v1743 = vmul.f32 %v1740, 1.442695
        %v1744 = vpow.pop %v1743
        %v1745 = vsel %vm566, %v1742, 0.0
        %1746 = vadd.xlane.f32.xlu0 %v1745
        %v1747 = vpop.xlane.xlu0 %1746
        %v1748 = vsel %vm566, %v1744, 0.0
        %1749 = vadd.xlane.f32.xlu0 %v1748
        %v1750 = vpop.xlane.xlu0 %1749
        %v1751 = vrcp.pop %v1747
        %v1752 = vmul.f32 %v1742, %v1751
        %v1753 = vrcp.pop %v1750
        %v1754 = vmul.f32 %v1744, %v1753
        %1755 = vrot.lane.b32.xlu0 %v564, 104
        %v1756 = vpop.permute.xlu0 %1755
        %v1759 = vsel %vm566, %v1752, 0
        %1761 = vmatprep.subr.mxu0 0.0
        %1762 = vmatpush1.msra.mxu0 %v1756
        %1763 = vmatprep.subr.mxu0 0.0
        %1764 = vmatpush1.msra.mxu0 0.0
        %1765 = vmatprep.subr.mxu0 0.0
        %1766 = vmatpush1.msra.mxu0 0.0
        %1767 = vmatprep.subr.mxu0 0.0
        %1768 = vmatpush1.msra.mxu0 0.0
        %1769 = vmatprep.subr.mxu0 0.0
        %1770 = vmatpush1.msra.mxu0 0.0
        %1771 = vmatprep.subr.mxu0 0.0
        %1772 = vmatpush1.msra.mxu0 0.0
        %1773 = vmatprep.subr.mxu0 0.0
        %1774 = vmatpush1.msra.mxu0 0.0
        %1775 = vmatprep.subr.mxu0 0.0
        %1776 = vmatpush1.msra.mxu0 0.0
        %1777 = vmatprep.subr.mxu0 0.0
        %1778 = vmatpush1.msra.mxu0 0.0
        %1779 = vmatprep.subr.mxu0 0.0
        %1780 = vmatpush1.msra.mxu0 0.0
        %1781 = vmatprep.subr.mxu0 0.0
        %1782 = vmatpush1.msra.mxu0 0.0
        %1783 = vmatprep.subr.mxu0 0.0
        %1784 = vmatpush1.msra.mxu0 0.0
        %1785 = vmatprep.subr.mxu0 0.0
        %1786 = vmatpush1.msra.mxu0 0.0
        %1787 = vmatprep.subr.mxu0 0.0
        %1788 = vmatpush1.msra.mxu0 0.0
        %1789 = vmatprep.subr.mxu0 0.0
        %1790 = vmatpush1.msra.mxu0 0.0
        %1791 = vmatprep.subr.mxu0 0.0
        %1792 = vmatpush1.msra.mxu0 0.0
        %1793 = vmatprep.subr.mxu0 0.0
        %1794 = vmatpush1.msra.mxu0 0.0
        %1795 = vmatprep.subr.mxu0 0.0
        %1796 = vmatpush1.msra.mxu0 0.0
        %1797 = vmatprep.subr.mxu0 0.0
        %1798 = vmatpush1.msra.mxu0 0.0
        %1799 = vmatprep.subr.mxu0 0.0
        %1800 = vmatpush1.msra.mxu0 0.0
        %1801 = vmatprep.subr.mxu0 0.0
        %1802 = vmatpush1.msra.mxu0 0.0
        %1803 = vmatprep.subr.mxu0 0.0
        %1804 = vmatpush1.msra.mxu0 0.0
        %1805 = vmatprep.subr.mxu0 0.0
        %1806 = vmatpush1.msra.mxu0 0.0
        %1807 = vmatprep.subr.mxu0 0.0
        %1808 = vmatpush1.msra.mxu0 0.0
        %1809 = vmatprep.subr.mxu0 0.0
        %1810 = vmatpush1.msra.mxu0 0.0
        %1811 = vmatprep.subr.mxu0 0.0
        %1812 = vmatpush1.msra.mxu0 0.0
        %1813 = vmatprep.subr.mxu0 0.0
        %1814 = vmatpush1.msra.mxu0 0.0
        %1815 = vmatprep.subr.mxu0 0.0
        %1816 = vmatpush1.msra.mxu0 0.0
        %1817 = vmatprep.subr.mxu0 0.0
        %1818 = vmatpush1.msra.mxu0 0.0
        %1819 = vmatprep.subr.mxu0 0.0
        %1820 = vmatpush1.msra.mxu0 0.0
        %1821 = vmatprep.subr.mxu0 0.0
        %1822 = vmatpush1.msra.mxu0 0.0
        %1823 = vmatprep.subr.mxu0 0.0
        %1824 = vmatpush1.msra.mxu0 0.0
        %1825 = vmatprep.mubr.f32.mxu0 0.0
        %1826 = vmatmul.mubr.f32.gmra.mrb[0].mxu0 %v1759
        %v1827 = vpop.f32.mrb[0].mxu0
        %v1828 = vadd.f32 0.0, %v1827
        %v1829 = vpop.f32.mrb[0].mxu0
        %1830 = vdwg.mxu0
        %1831 = vrot.lane.b32.xlu0 %v565, 104
        %v1832 = vpop.permute.xlu0 %1831
        %v1835 = vsel %vm566, %v1754, 0
        %1837 = vmatprep.subr.mxu0 0.0
        %1838 = vmatpush1.msra.mxu0 %v1832
        %1839 = vmatprep.subr.mxu0 0.0
        %1840 = vmatpush1.msra.mxu0 0.0
        %1841 = vmatprep.subr.mxu0 0.0
        %1842 = vmatpush1.msra.mxu0 0.0
        %1843 = vmatprep.subr.mxu0 0.0
        %1844 = vmatpush1.msra.mxu0 0.0
        %1845 = vmatprep.subr.mxu0 0.0
        %1846 = vmatpush1.msra.mxu0 0.0
        %1847 = vmatprep.subr.mxu0 0.0
        %1848 = vmatpush1.msra.mxu0 0.0
        %1849 = vmatprep.subr.mxu0 0.0
        %1850 = vmatpush1.msra.mxu0 0.0
        %1851 = vmatprep.subr.mxu0 0.0
        %1852 = vmatpush1.msra.mxu0 0.0
        %1853 = vmatprep.subr.mxu0 0.0
        %1854 = vmatpush1.msra.mxu0 0.0
        %1855 = vmatprep.subr.mxu0 0.0
        %1856 = vmatpush1.msra.mxu0 0.0
        %1857 = vmatprep.subr.mxu0 0.0
        %1858 = vmatpush1.msra.mxu0 0.0
        %1859 = vmatprep.subr.mxu0 0.0
        %1860 = vmatpush1.msra.mxu0 0.0
        %1861 = vmatprep.subr.mxu0 0.0
        %1862 = vmatpush1.msra.mxu0 0.0
        %1863 = vmatprep.subr.mxu0 0.0
        %1864 = vmatpush1.msra.mxu0 0.0
        %1865 = vmatprep.subr.mxu0 0.0
        %1866 = vmatpush1.msra.mxu0 0.0
        %1867 = vmatprep.subr.mxu0 0.0
        %1868 = vmatpush1.msra.mxu0 0.0
        %1869 = vmatprep.subr.mxu0 0.0
        %1870 = vmatpush1.msra.mxu0 0.0
        %1871 = vmatprep.subr.mxu0 0.0
        %1872 = vmatpush1.msra.mxu0 0.0
        %1873 = vmatprep.subr.mxu0 0.0
        %1874 = vmatpush1.msra.mxu0 0.0
        %1875 = vmatprep.subr.mxu0 0.0
        %1876 = vmatpush1.msra.mxu0 0.0
        %1877 = vmatprep.subr.mxu0 0.0
        %1878 = vmatpush1.msra.mxu0 0.0
        %1879 = vmatprep.subr.mxu0 0.0
        %1880 = vmatpush1.msra.mxu0 0.0
        %1881 = vmatprep.subr.mxu0 0.0
        %1882 = vmatpush1.msra.mxu0 0.0
        %1883 = vmatprep.subr.mxu0 0.0
        %1884 = vmatpush1.msra.mxu0 0.0
        %1885 = vmatprep.subr.mxu0 0.0
        %1886 = vmatpush1.msra.mxu0 0.0
        %1887 = vmatprep.subr.mxu0 0.0
        %1888 = vmatpush1.msra.mxu0 0.0
        %1889 = vmatprep.subr.mxu0 0.0
        %1890 = vmatpush1.msra.mxu0 0.0
        %1891 = vmatprep.subr.mxu0 0.0
        %1892 = vmatpush1.msra.mxu0 0.0
        %1893 = vmatprep.subr.mxu0 0.0
        %1894 = vmatpush1.msra.mxu0 0.0
        %1895 = vmatprep.subr.mxu0 0.0
        %1896 = vmatpush1.msra.mxu0 0.0
        %1897 = vmatprep.subr.mxu0 0.0
        %1898 = vmatpush1.msra.mxu0 0.0
        %1899 = vmatprep.subr.mxu0 0.0
        %1900 = vmatpush1.msra.mxu0 0.0
        %1901 = vmatprep.mubr.f32.mxu0 0.0
        %1902 = vmatmul.mubr.f32.gmra.mrb[0].mxu0 %v1835
        %v1903 = vpop.f32.mrb[0].mxu0
        %v1904 = vadd.f32 0.0, %v1903
        %v1905 = vpop.f32.mrb[0].mxu0
        %1906 = vdwg.mxu0
        %1909 = vrot.lane.b32.xlu0 %v1159, 8
        %v1910 = vpop.permute.xlu0 %1909
        %1911 = vrot.lane.b32.xlu0 %v1236, 8
        %v1912 = vpop.permute.xlu0 %1911
        %1917 = vrot.lane.b32.xlu0 %v1494, 16
        %v1918 = vpop.permute.xlu0 %1917
        %1919 = vrot.lane.b32.xlu0 %v1570, 16
        %v1920 = vpop.permute.xlu0 %1919
        %1925 = vrot.lane.b32.xlu0 %v1828, 24
        %v1926 = vpop.permute.xlu0 %1925
        %1927 = vrot.lane.b32.xlu0 %v1904, 24
        %v1928 = vpop.permute.xlu0 %1927
        %v1931 = vsel %vm566, %v827, %v1910
        %v1932 = vsel %vm566, %v900, %v1912
        %vm1933 = vcmask 130048
        %v1934 = vsel %vm1933, %v1931, %v1918
        %v1935 = vsel %vm1933, %v1932, %v1920
        %vm1936 = vcmask 195584
        %v1937 = vsel %vm1936, %v1934, %v1926
        %v1938 = vsel %vm1936, %v1935, %v1928
        %v1939 = vld [vmem:[%s247 + $0xc] sm:$0xf]
        %v1940 = vld [vmem:[%s247 + $0x24] sm:$0xf]
        %v1941 = vld [vmem:[%s247 + $0x3c] sm:$0xf]
        %v1942 = vld [vmem:[%s247 + $0x54] sm:$0xf]
        %v1943 = vpack.c.bf16 %v1938, %v1937
        %v1944 = vlaneseq
        %v1945 = vshrl.u32 %v1944, 7
        %v1946 = vsub.s32 3, %v1945
        %v1947 = vrot.slane %v299, %v1946
        %v1952 = vunpack.c.l.b16 %v1939
        %v1953 = vunpack.c.l.b16 %v1940
        %v1954 = vunpack.c.l.b16 %v1941
        %v1955 = vunpack.c.l.b16 %v1942
        %v1956 = vpack.c.b16 %v1953, %v1952
        %v1957 = vpack.c.b16 %v1955, %v1954
        %vm1960 = vcmask 261120
        %v1962 = vsel %vm1960, %v1943, 0
        %1964 = vmatprep.subr.bf16.mxu0 0
        %1965 = vmatpush1.bf16.msra.mxu0 %v1956
        %1966 = vmatprep.subr.bf16.mxu0 0
        %1967 = vmatpush1.bf16.msra.mxu0 %v1957
        %1968 = vmatprep.subr.bf16.mxu0 0
        %1969 = vmatpush1.bf16.msra.mxu0 0
        %1970 = vmatprep.subr.bf16.mxu0 0
        %1971 = vmatpush1.bf16.msra.mxu0 0
        %1972 = vmatprep.subr.bf16.mxu0 0
        %1973 = vmatpush1.bf16.msra.mxu0 0
        %1974 = vmatprep.subr.bf16.mxu0 0
        %1975 = vmatpush1.bf16.msra.mxu0 0
        %1976 = vmatprep.subr.bf16.mxu0 0
        %1977 = vmatpush1.bf16.msra.mxu0 0
        %1978 = vmatprep.subr.bf16.mxu0 0
        %1979 = vmatpush1.bf16.msra.mxu0 0
        %1980 = vmatprep.subr.bf16.mxu0 0
        %1981 = vmatpush1.bf16.msra.mxu0 0
        %1982 = vmatprep.subr.bf16.mxu0 0
        %1983 = vmatpush1.bf16.msra.mxu0 0
        %1984 = vmatprep.subr.bf16.mxu0 0
        %1985 = vmatpush1.bf16.msra.mxu0 0
        %1986 = vmatprep.subr.bf16.mxu0 0
        %1987 = vmatpush1.bf16.msra.mxu0 0
        %1988 = vmatprep.subr.bf16.mxu0 0
        %1989 = vmatpush1.bf16.msra.mxu0 0
        %1990 = vmatprep.subr.bf16.mxu0 0
        %1991 = vmatpush1.bf16.msra.mxu0 0
        %1992 = vmatprep.subr.bf16.mxu0 0
        %1993 = vmatpush1.bf16.msra.mxu0 0
        %1994 = vmatprep.subr.bf16.mxu0 0
        %1995 = vmatpush1.bf16.msra.mxu0 0
        %1996 = vmatprep.mubr.bf16.mxu0 0
        %1997 = vmatmul.mubr.bf16.gmra.mrb[0].mxu0 %v1962
        %v1998 = vpop.f32.mrb[0].mxu0
        %v1999 = vadd.f32 %v1947, %v1998
        %v2000 = vpop.f32.mrb[0].mxu0
        %v2001 = vpop.f32.mrb[0].mxu0
        %v2002 = vadd.f32 %v1947, %v2001
        %v2003 = vpop.f32.mrb[0].mxu0
        %2004 = vdwg.mxu0
        %v2005 = vadd.f32 %v297, %v1999
        %v2006 = vadd.f32 %v298, %v2002
        %2007 = vadd.xlane.f32.xlu0 %v2005
        %v2008 = vpop.xlane.xlu0 %2007
        %2009 = vadd.xlane.f32.xlu0 %v2006
        %v2010 = vpop.xlane.xlu0 %2009
        %v2011 = vmul.f32 %v2008, 0.03125
        %v2012 = vmul.f32 %v2010, 0.03125
        %v2013 = vsub.f32 %v2005, %v2011
        %v2014 = vsub.f32 %v2006, %v2012
        %v2015 = vmul.f32 %v2013, %v288
        %v2016 = vmul.f32 %v2014, %v288
        %v2017 = vmul.f32 %v2015, %v2015
        %v2018 = vmul.f32 %v2016, %v2016
        %2019 = vadd.xlane.f32.xlu0 %v2017
        %v2020 = vpop.xlane.xlu0 %2019
        %2021 = vadd.xlane.f32.xlu0 %v2018
        %v2022 = vpop.xlane.xlu0 %2021
        %v2023 = vmul.f32 %v2020, 0.03125
        %v2024 = vmul.f32 %v2022, 0.03125
        %v2025 = vadd.f32 %v2023, 1e-12
        %v2026 = vadd.f32 %v2024, 1e-12
        %v2027 = vrsqrt.pop %v2025
        %v2028 = vrsqrt.pop %v2026
        %v2029 = vmul.f32 %v2015, %v2027
        %v2030 = vmul.f32 %v2016, %v2028
        %v2031 = vlaneseq
        %v2032 = vshrl.u32 %v2031, 7
        %v2033 = vsub.s32 4, %v2032
        %v2034 = vrot.slane %v299, %v2033
        %v2035 = vmul.f32 %v2029, %v2034
        %v2036 = vmul.f32 %v2030, %v2034
        %v2037 = vlaneseq
        %v2038 = vshrl.u32 %v2037, 7
        %v2039 = vsub.s32 5, %v2038
        %v2040 = vrot.slane %v299, %v2039
        %v2041 = vadd.f32 %v2035, %v2040
        %v2042 = vadd.f32 %v2036, %v2040
        %v2043 = vpack.c.bf16 %v2042, %v2041
        %v2044 = vld [vmem:[%s247 + $0x10] sm:$0xf]
        %v2045 = vld [vmem:[%s247 + $0x28] sm:$0xf]
        %v2046 = vld [vmem:[%s247 + $0x40] sm:$0xf]
        %v2047 = vld [vmem:[%s247 + $0x58] sm:$0xf]
        %v2048 = vld [vmem:[%s247 + $0x70] sm:$0xf]
        %v2049 = vld [vmem:[%s247 + $0x88] sm:$0xf]
        %v2050 = vld [vmem:[%s247 + $0xa0] sm:$0xf]
        %v2051 = vld [vmem:[%s247 + $0xb8] sm:$0xf]
        %v2052 = vld [vmem:[%s247 + $0xd0] sm:$0xf]
        %v2053 = vld [vmem:[%s247 + $0xe8] sm:$0xf]
        %v2054 = vld [vmem:[%s247 + $0x100] sm:$0xf]
        %v2055 = vld [vmem:[%s247 + $0x118] sm:$0xf]
        %v2056 = vld [vmem:[%s247 + $0x130] sm:$0xf]
        %v2057 = vld [vmem:[%s247 + $0x148] sm:$0xf]
        %v2058 = vld [vmem:[%s247 + $0x160] sm:$0xf]
        %v2059 = vld [vmem:[%s247 + $0x178] sm:$0xf]
        %v2060 = vlaneseq
        %v2061 = vshrl.u32 %v2060, 7
        %v2062 = vsub.s32 6, %v2061
        %v2063 = vrot.slane %v299, %v2062
        %v2080 = vunpack.c.l.b16 %v2044
        %v2081 = vunpack.c.l.b16 %v2045
        %v2082 = vunpack.c.l.b16 %v2046
        %v2083 = vunpack.c.l.b16 %v2047
        %v2084 = vunpack.c.l.b16 %v2048
        %v2085 = vunpack.c.l.b16 %v2049
        %v2086 = vunpack.c.l.b16 %v2050
        %v2087 = vunpack.c.l.b16 %v2051
        %v2088 = vunpack.c.l.b16 %v2052
        %v2089 = vunpack.c.l.b16 %v2053
        %v2090 = vunpack.c.l.b16 %v2054
        %v2091 = vunpack.c.l.b16 %v2055
        %v2092 = vunpack.c.l.b16 %v2056
        %v2093 = vunpack.c.l.b16 %v2057
        %v2094 = vunpack.c.l.b16 %v2058
        %v2095 = vunpack.c.l.b16 %v2059
        %v2096 = vpack.c.b16 %v2081, %v2080
        %v2097 = vpack.c.b16 %v2083, %v2082
        %v2098 = vpack.c.b16 %v2085, %v2084
        %v2099 = vpack.c.b16 %v2087, %v2086
        %v2100 = vpack.c.b16 %v2089, %v2088
        %v2101 = vpack.c.b16 %v2091, %v2090
        %v2102 = vpack.c.b16 %v2093, %v2092
        %v2103 = vpack.c.b16 %v2095, %v2094
        %2112 = vmatprep.subr.bf16.mxu0 0
        %2113 = vmatpush1.bf16.msra.mxu0 %v2096
        %2114 = vmatprep.subr.bf16.mxu0 0
        %2115 = vmatpush1.bf16.msra.mxu0 %v2097
        %2116 = vmatprep.subr.bf16.mxu0 0
        %2117 = vmatpush1.bf16.msra.mxu0 %v2098
        %2118 = vmatprep.subr.bf16.mxu0 0
        %2119 = vmatpush1.bf16.msra.mxu0 %v2099
        %2120 = vmatprep.subr.bf16.mxu0 0
        %2121 = vmatpush1.bf16.msra.mxu0 %v2100
        %2122 = vmatprep.subr.bf16.mxu0 0
        %2123 = vmatpush1.bf16.msra.mxu0 %v2101
        %2124 = vmatprep.subr.bf16.mxu0 0
        %2125 = vmatpush1.bf16.msra.mxu0 %v2102
        %2126 = vmatprep.subr.bf16.mxu0 0
        %2127 = vmatpush1.bf16.msra.mxu0 %v2103
        %2128 = vmatprep.subr.bf16.mxu0 0
        %2129 = vmatpush1.bf16.msra.mxu0 0
        %2130 = vmatprep.subr.bf16.mxu0 0
        %2131 = vmatpush1.bf16.msra.mxu0 0
        %2132 = vmatprep.subr.bf16.mxu0 0
        %2133 = vmatpush1.bf16.msra.mxu0 0
        %2134 = vmatprep.subr.bf16.mxu0 0
        %2135 = vmatpush1.bf16.msra.mxu0 0
        %2136 = vmatprep.subr.bf16.mxu0 0
        %2137 = vmatpush1.bf16.msra.mxu0 0
        %2138 = vmatprep.subr.bf16.mxu0 0
        %2139 = vmatpush1.bf16.msra.mxu0 0
        %2140 = vmatprep.subr.bf16.mxu0 0
        %2141 = vmatpush1.bf16.msra.mxu0 0
        %2142 = vmatprep.subr.bf16.mxu0 0
        %2143 = vmatpush1.bf16.msra.mxu0 0
        %2144 = vmatprep.mubr.bf16.mxu0 0
        %2145 = vmatmul.mubr.bf16.gmra.mrb[0].mxu0 %v2043
        %v2146 = vpop.f32.mrb[0].mxu0
        %v2147 = vadd.f32 %v2063, %v2146
        %v2148 = vpop.f32.mrb[0].mxu0
        %v2149 = vpop.f32.mrb[0].mxu0
        %v2150 = vadd.f32 %v2063, %v2149
        %v2151 = vpop.f32.mrb[0].mxu0
        %2152 = vdwg.mxu0
        %v2153 = vmul.f32 %v2147, %v2147
        %v2154 = vmul.f32 %v2150, %v2150
        %v2155 = vmul.f32 %v2147, %v2153
        %v2156 = vmul.f32 %v2150, %v2154
        %v2157 = vmul.f32 %v2155, 0.044715
        %v2158 = vmul.f32 %v2156, 0.044715
        %v2159 = vadd.f32 %v2147, %v2157
        %v2160 = vadd.f32 %v2150, %v2158
        %v2161 = vmul.f32 %v2159, 0.7978846
        %v2162 = vmul.f32 %v2160, 0.7978846
        %v2163 = vtanh.pop %v2161
        %v2164 = vtanh.pop %v2162
        %v2165 = vadd.f32 %v2163, 1.0
        %v2166 = vadd.f32 %v2164, 1.0
        %v2167 = vmul.f32 %v2165, 0.5
        %v2168 = vmul.f32 %v2166, 0.5
        %v2169 = vmul.f32 %v2147, %v2167
        %v2170 = vmul.f32 %v2150, %v2168
        %v2171 = vpack.c.bf16 %v2170, %v2169
        %v2172 = vld [vmem:[%s247 + $0x14] sm:$0xf]
        %v2173 = vld [vmem:[%s247 + $0x2c] sm:$0xf]
        %v2174 = vld [vmem:[%s247 + $0x44] sm:$0xf]
        %v2175 = vld [vmem:[%s247 + $0x5c] sm:$0xf]
        %v2176 = vld [vmem:[%s247 + $0x74] sm:$0xf]
        %v2177 = vld [vmem:[%s247 + $0x8c] sm:$0xf]
        %v2178 = vld [vmem:[%s247 + $0xa4] sm:$0xf]
        %v2179 = vld [vmem:[%s247 + $0xbc] sm:$0xf]
        %v2180 = vld [vmem:[%s247 + $0xd4] sm:$0xf]
        %v2181 = vld [vmem:[%s247 + $0xec] sm:$0xf]
        %v2182 = vld [vmem:[%s247 + $0x104] sm:$0xf]
        %v2183 = vld [vmem:[%s247 + $0x11c] sm:$0xf]
        %v2184 = vld [vmem:[%s247 + $0x134] sm:$0xf]
        %v2185 = vld [vmem:[%s247 + $0x14c] sm:$0xf]
        %v2186 = vld [vmem:[%s247 + $0x164] sm:$0xf]
        %v2187 = vld [vmem:[%s247 + $0x17c] sm:$0xf]
        %v2188 = vlaneseq
        %v2189 = vshrl.u32 %v2188, 7
        %v2190 = vsub.s32 7, %v2189
        %v2191 = vrot.slane %v299, %v2190
        %v2208 = vunpack.c.l.b16 %v2172
        %v2209 = vunpack.c.l.b16 %v2173
        %v2210 = vunpack.c.l.b16 %v2174
        %v2211 = vunpack.c.l.b16 %v2175
        %v2212 = vunpack.c.l.b16 %v2176
        %v2213 = vunpack.c.l.b16 %v2177
        %v2214 = vunpack.c.l.b16 %v2178
        %v2215 = vunpack.c.l.b16 %v2179
        %v2216 = vunpack.c.l.b16 %v2180
        %v2217 = vunpack.c.l.b16 %v2181
        %v2218 = vunpack.c.l.b16 %v2182
        %v2219 = vunpack.c.l.b16 %v2183
        %v2220 = vunpack.c.l.b16 %v2184
        %v2221 = vunpack.c.l.b16 %v2185
        %v2222 = vunpack.c.l.b16 %v2186
        %v2223 = vunpack.c.l.b16 %v2187
        %v2224 = vpack.c.b16 %v2209, %v2208
        %v2225 = vpack.c.b16 %v2211, %v2210
        %v2226 = vpack.c.b16 %v2213, %v2212
        %v2227 = vpack.c.b16 %v2215, %v2214
        %v2228 = vpack.c.b16 %v2217, %v2216
        %v2229 = vpack.c.b16 %v2219, %v2218
        %v2230 = vpack.c.b16 %v2221, %v2220
        %v2231 = vpack.c.b16 %v2223, %v2222
        %2240 = vmatprep.subr.bf16.mxu0 0
        %2241 = vmatpush1.bf16.msra.mxu0 %v2224
        %2242 = vmatprep.subr.bf16.mxu0 0
        %2243 = vmatpush1.bf16.msra.mxu0 %v2225
        %2244 = vmatprep.subr.bf16.mxu0 0
        %2245 = vmatpush1.bf16.msra.mxu0 %v2226
        %2246 = vmatprep.subr.bf16.mxu0 0
        %2247 = vmatpush1.bf16.msra.mxu0 %v2227
        %2248 = vmatprep.subr.bf16.mxu0 0
        %2249 = vmatpush1.bf16.msra.mxu0 %v2228
        %2250 = vmatprep.subr.bf16.mxu0 0
        %2251 = vmatpush1.bf16.msra.mxu0 %v2229
        %2252 = vmatprep.subr.bf16.mxu0 0
        %2253 = vmatpush1.bf16.msra.mxu0 %v2230
        %2254 = vmatprep.subr.bf16.mxu0 0
        %2255 = vmatpush1.bf16.msra.mxu0 %v2231
        %2256 = vmatprep.subr.bf16.mxu0 0
        %2257 = vmatpush1.bf16.msra.mxu0 0
        %2258 = vmatprep.subr.bf16.mxu0 0
        %2259 = vmatpush1.bf16.msra.mxu0 0
        %2260 = vmatprep.subr.bf16.mxu0 0
        %2261 = vmatpush1.bf16.msra.mxu0 0
        %2262 = vmatprep.subr.bf16.mxu0 0
        %2263 = vmatpush1.bf16.msra.mxu0 0
        %2264 = vmatprep.subr.bf16.mxu0 0
        %2265 = vmatpush1.bf16.msra.mxu0 0
        %2266 = vmatprep.subr.bf16.mxu0 0
        %2267 = vmatpush1.bf16.msra.mxu0 0
        %2268 = vmatprep.subr.bf16.mxu0 0
        %2269 = vmatpush1.bf16.msra.mxu0 0
        %2270 = vmatprep.subr.bf16.mxu0 0
        %2271 = vmatpush1.bf16.msra.mxu0 0
        %2272 = vmatprep.mubr.bf16.mxu0 0
        %2273 = vmatmul.mubr.bf16.gmra.mrb[0].mxu0 %v2171
        %v2274 = vpop.f32.mrb[0].mxu0
        %v2275 = vadd.f32 %v2191, %v2274
        %v2276 = vpop.f32.mrb[0].mxu0
        %v2277 = vpop.f32.mrb[0].mxu0
        %v2278 = vadd.f32 %v2191, %v2277
        %v2279 = vpop.f32.mrb[0].mxu0
        %2280 = vdwg.mxu0
        %v2281 = vadd.f32 %v2041, %v2275
        %v2282 = vadd.f32 %v2042, %v2278
        %2283 = vadd.xlane.f32.xlu0 %v2281
        %v2284 = vpop.xlane.xlu0 %2283
        %2285 = vadd.xlane.f32.xlu0 %v2282
        %v2286 = vpop.xlane.xlu0 %2285
        %v2287 = vmul.f32 %v2284, 0.03125
        %v2288 = vmul.f32 %v2286, 0.03125
        %v2289 = vsub.f32 %v2281, %v2287
        %v2290 = vsub.f32 %v2282, %v2288
        %v2291 = vmul.f32 %v2289, %v288
        %v2292 = vmul.f32 %v2290, %v288
        %v2293 = vmul.f32 %v2291, %v2291
        %v2294 = vmul.f32 %v2292, %v2292
        %2295 = vadd.xlane.f32.xlu0 %v2293
        %v2296 = vpop.xlane.xlu0 %2295
        %2297 = vadd.xlane.f32.xlu0 %v2294
        %v2298 = vpop.xlane.xlu0 %2297
        %v2299 = vmul.f32 %v2296, 0.03125
        %v2300 = vmul.f32 %v2298, 0.03125
        %v2301 = vadd.f32 %v2299, 1e-12
        %v2302 = vadd.f32 %v2300, 1e-12
        %v2303 = vrsqrt.pop %v2301
        %v2304 = vrsqrt.pop %v2302
        %v2305 = vmul.f32 %v2291, %v2303
        %v2306 = vmul.f32 %v2292, %v2304
        %v2307 = vlaneseq
        %v2308 = vshrl.u32 %v2307, 7
        %v2309 = vsub.s32 0, %v2308
        %v2310 = vrot.slane %v300, %v2309
        %v2311 = vmul.f32 %v2305, %v2310
        %v2312 = vmul.f32 %v2306, %v2310
        %v2313 = vlaneseq
        %v2314 = vshrl.u32 %v2313, 7
        %v2315 = vsub.s32 1, %v2314
        %v2316 = vrot.slane %v300, %v2315
        %v2317 = vadd.f32 %v2311, %v2316
        %v2318 = vadd.f32 %v2312, %v2316
        %2319 = vst [vmem:[#allocation2] sm:$0xff] %v2317
        %2320 = vst [vmem:[#allocation2 + $0x8] sm:$0xff] %v2318
        %p2321 = scmp.eq.s32.totalorder %s21, 1
        // Predicated region
        $region57: #{tpu_custom_call.1} parent=39 // pred_check
          %p2322 = pneg %p2321
        $region58: #{tpu_custom_call.1} parent=39 // pred_check_branch
          %2324 = sbr.rel (%p2322) target = $region60
        $region59: #{tpu_custom_call.1} parent=39 // pred_region
          %v2325 = vld [vmem:[%s2] sm:$0x3]
          %v2327 = vsel %vm1933, %v2325, 0
          %2329 = vmatprep.subr.mxu0 0.0
          %2330 = vmatpush1.msra.mxu0 %v2317
          %2331 = vmatprep.subr.mxu0 0.0
          %2332 = vmatpush1.msra.mxu0 %v2318
          %2333 = vmatprep.subr.mxu0 0.0
          %2334 = vmatpush1.msra.mxu0 0.0
          %2335 = vmatprep.subr.mxu0 0.0
          %2336 = vmatpush1.msra.mxu0 0.0
          %2337 = vmatprep.subr.mxu0 0.0
          %2338 = vmatpush1.msra.mxu0 0.0
          %2339 = vmatprep.subr.mxu0 0.0
          %2340 = vmatpush1.msra.mxu0 0.0
          %2341 = vmatprep.subr.mxu0 0.0
          %2342 = vmatpush1.msra.mxu0 0.0
          %2343 = vmatprep.subr.mxu0 0.0
          %2344 = vmatpush1.msra.mxu0 0.0
          %2345 = vmatprep.subr.mxu0 0.0
          %2346 = vmatpush1.msra.mxu0 0.0
          %2347 = vmatprep.subr.mxu0 0.0
          %2348 = vmatpush1.msra.mxu0 0.0
          %2349 = vmatprep.subr.mxu0 0.0
          %2350 = vmatpush1.msra.mxu0 0.0
          %2351 = vmatprep.subr.mxu0 0.0
          %2352 = vmatpush1.msra.mxu0 0.0
          %2353 = vmatprep.subr.mxu0 0.0
          %2354 = vmatpush1.msra.mxu0 0.0
          %2355 = vmatprep.subr.mxu0 0.0
          %2356 = vmatpush1.msra.mxu0 0.0
          %2357 = vmatprep.subr.mxu0 0.0
          %2358 = vmatpush1.msra.mxu0 0.0
          %2359 = vmatprep.subr.mxu0 0.0
          %2360 = vmatpush1.msra.mxu0 0.0
          %2361 = vmatprep.subr.mxu0 0.0
          %2362 = vmatpush1.msra.mxu0 0.0
          %2363 = vmatprep.subr.mxu0 0.0
          %2364 = vmatpush1.msra.mxu0 0.0
          %2365 = vmatprep.subr.mxu0 0.0
          %2366 = vmatpush1.msra.mxu0 0.0
          %2367 = vmatprep.subr.mxu0 0.0
          %2368 = vmatpush1.msra.mxu0 0.0
          %2369 = vmatprep.subr.mxu0 0.0
          %2370 = vmatpush1.msra.mxu0 0.0
          %2371 = vmatprep.subr.mxu0 0.0
          %2372 = vmatpush1.msra.mxu0 0.0
          %2373 = vmatprep.subr.mxu0 0.0
          %2374 = vmatpush1.msra.mxu0 0.0
          %2375 = vmatprep.subr.mxu0 0.0
          %2376 = vmatpush1.msra.mxu0 0.0
          %2377 = vmatprep.subr.mxu0 0.0
          %2378 = vmatpush1.msra.mxu0 0.0
          %2379 = vmatprep.subr.mxu0 0.0
          %2380 = vmatpush1.msra.mxu0 0.0
          %2381 = vmatprep.subr.mxu0 0.0
          %2382 = vmatpush1.msra.mxu0 0.0
          %2383 = vmatprep.subr.mxu0 0.0
          %2384 = vmatpush1.msra.mxu0 0.0
          %2385 = vmatprep.subr.mxu0 0.0
          %2386 = vmatpush1.msra.mxu0 0.0
          %2387 = vmatprep.subr.mxu0 0.0
          %2388 = vmatpush1.msra.mxu0 0.0
          %2389 = vmatprep.subr.mxu0 0.0
          %2390 = vmatpush1.msra.mxu0 0.0
          %2391 = vmatprep.subr.mxu0 0.0
          %2392 = vmatpush1.msra.mxu0 0.0
          %2393 = vmatprep.mubr.f32.mxu0 0.0
          %2394 = vmatmul.mubr.f32.gmra.mrb[0].mxu0 %v2327
          %v2395 = vpop.f32.mrb[0].mxu0
          %v2396 = vadd.f32 0.0, %v2395
          %v2397 = vpop.f32.mrb[0].mxu0
          %2398 = vdwg.mxu0
          %2399 = vst [vmem:[#allocation9] sm:$0x3] %v2396
        $region60: #{tpu_custom_call.1} parent=39 // pred_fallthru
          _
        // Predicated region
        $region61: #{tpu_custom_call.1} parent=39 // pred_check
          %p2400 = pneg %p149
        $region62: #{tpu_custom_call.1} parent=39 // pred_check_branch
          %2402 = sbr.rel (%p2400) target = $region64
        $region63: #{tpu_custom_call.1} parent=39 // pred_region
          %s2404 = ssub.s32 32, 32
          %2405 = vsyncadd [#allocation5], %s2404
          %s2407 = sshll.u32 [#allocation9], 4
          %s2408 = int_to_ptr.vmem [resolvable:$true] %s2407
          %2410 = dma.vmem_to_hbm [thread:$0]  %s2408, 32, %s5, [#allocation5]
        $region64: #{tpu_custom_call.1} parent=39 // pred_fallthru
          _
        // Predicated region
        $region65: #{tpu_custom_call.1} parent=39 // pred_check
          %p2411 = pneg %p149
        $region66: #{tpu_custom_call.1} parent=39 // pred_check_branch
          %2413 = sbr.rel (%p2411) target = $region68
        $region67: #{tpu_custom_call.1} parent=39 // pred_region
          %2414 = dma.done [#allocation5], 32
        $region68: #{tpu_custom_call.1} parent=39 // pred_fallthru
          _
      $region40: #{tpu_custom_call.1} parent=5 // pred_fallthru
        _
      %p2415 = scmp.le.s32.totalorder 2, %s16
      // Predicated region
      $region69: #{tpu_custom_call.1} parent=5 // pred_check
        %p2416 = pneg %p2415
      $region70: #{tpu_custom_call.1} parent=5 // pred_check_branch
        %2418 = sbr.rel (%p2416) target = $region72
      $region71: #{tpu_custom_call.1} parent=5 // pred_region
        %s2419 = ssub.s32 %s16, 2
      $region72: #{tpu_custom_call.1} parent=5 // pred_fallthru
        _
    $region6: #{tpu_custom_call.1} parent=1 // loop_footer
      %s20 = sadd.s32 1, %s16
    $region7: #{tpu_custom_call.1} parent=1 // loop_footer_branch
      %15 = sbr.rel target = $region3
    $region8: #{tpu_custom_call.1} parent=1 // loop_exit
      _
    %2420 = vsyncpa [#allocation4], 1
    %s2421 = scalar_lea.sflag [#allocation4], 1
    %2422 = vsyncpa %s2421, 1
    %2423 = vsyncpa [#allocation7], 1
    %s2424 = scalar_lea.sflag [#allocation7], 1
    %2425 = vsyncpa %s2424, 1
    %2426 = vsyncpa [#allocation5], 1
    %s2427 = scalar_lea.sflag [#allocation5], 1
    %2428 = vsyncpa %s2427, 1

</llo_original>
